<compile_context>
chip_gen: v6e
topology: v6e:2x2x1
jax: 0.10.0
libtpu: 0.0.40
codegen_flags: <defaults>
</compile_context>

<pallas_src>
import jax
import jax.numpy as jnp
from jax.experimental import pallas as pl
from jax.experimental.pallas import tpu as pltpu


def _round_up(x, m):
    return ((x + m - 1) // m) * m


def _attention_kernel(enc_ref, decproj_ref, wenc_ref, vrow_ref, out_ref):
    """One block of Bb batch rows per grid step.

    enc_ref     : [Bb, S, E2]  encoder outputs (stream dtype)
    decproj_ref : [Bb, D]      decoder hidden already projected by W_dec^T (f32)
    wenc_ref    : [E2, D]      W_enc^T (stream dtype)
    vrow_ref    : [1, D]       attn_v weight as a row (f32)
    out_ref     : [Bb, P]      lane-dense slab: [:, :E2]=context, [:, E2:E2+S]=weights
    """
    Bb, S, E2 = enc_ref.shape
    P = out_ref.shape[-1]

    enc = enc_ref[...]                                              # [Bb, S, E2]

    # Encoder projection as ONE dense MXU matmul over all Bb*S rows.
    # (reshape is free when S is a multiple of 8 -- enforced by the demo shapes;
    #  for other S Mosaic inserts a relayout copy.)
    proj = jnp.dot(enc.reshape(Bb * S, E2), wenc_ref[...],
                   preferred_element_type=jnp.float32)              # [Bb*S, D]
    D = proj.shape[-1]
    proj = proj.reshape(Bb, S, D)

    # energy = tanh(enc @ W_enc^T + dec @ W_dec^T); dec projection broadcast over S.
    energy = jnp.tanh(proj + decproj_ref[...][:, None, :])          # [Bb, S, D] f32

    # scores = energy . v  -- VPU multiply + lane reduce (no degenerate N=1 matmul).
    scores = jnp.sum(energy * vrow_ref[...][None, :, :], axis=-1)   # [Bb, S]

    # Numerically stable softmax over S (lane axis).
    m = jnp.max(scores, axis=-1, keepdims=True)
    e = jnp.exp(scores - m)
    denom = jnp.sum(e, axis=-1, keepdims=True)
    w = e * pl.reciprocal(denom, approx=True)                       # [Bb, S] f32

    # context = sum_s w[b,s] * enc[b,s,:]  -- VPU multiply + sublane reduce
    # (replaces Bb degenerate M=1 MXU matmuls).
    ctx = jnp.sum(w[:, :, None] * enc.astype(jnp.float32), axis=1)  # [Bb, E2]

    # Build one lane-dense [Bb, P] slab in registers and store it full-width
    # (avoids two narrow masked vst streams for ctx / weights).
    pad = P - (E2 + S)
    pieces = [ctx, w]
    if pad:
        pieces.append(jnp.zeros((Bb, pad), jnp.float32))
    out_ref[...] = jnp.concatenate(pieces, axis=-1).astype(out_ref.dtype)


def attention_forward(decoder_hidden, encoder_outputs, w_enc, w_dec, v,
                      *, stream_dtype=None, vmem_budget_bytes=None):
    """Pallas implementation of the PyTorch Attention.forward.

    decoder_hidden  : [B, D]       (dec_hid_dim = D)
    encoder_outputs : [B, S, E2]   (E2 = 2 * enc_hid_dim)
    w_enc : [D, E2]  PyTorch Linear weight for attn_W_enc
    w_dec : [D, D]   PyTorch Linear weight for attn_W_dec
    v     : [1, D]   PyTorch Linear weight for attn_v
    stream_dtype : dtype for streaming encoder_outputs / w_enc into the kernel
                   (pass jnp.bfloat16 to halve HBM traffic; default = input dtype).
    Returns (context_vector [B, E2], attention_weights [B, S]).
    """
    B, S, E2 = encoder_outputs.shape
    D = decoder_hidden.shape[1]
    out_dtype = encoder_outputs.dtype
    sdt = jnp.dtype(stream_dtype) if stream_dtype is not None else jnp.dtype(out_dtype)

    # Hoisted decoder projection: one [B, D] @ [D, D] matmul; kept in f32 so
    # bf16 streaming of activations does not degrade the decoder path.
    dec_proj = jnp.dot(decoder_hidden.astype(jnp.float32),
                       jnp.asarray(w_dec, jnp.float32).T)            # [B, D] f32
    w_enc_t = jnp.asarray(w_enc, jnp.float32).T.astype(sdt)          # [E2, D]
    v_row = jnp.asarray(v, jnp.float32).reshape(1, D)                # [1, D]
    enc_in = encoder_outputs.astype(sdt)

    # Packed lane-dense output slab width (multiple of 128 lanes).
    P = _round_up(E2 + S, 128)

    # ---- batch-tile (Bb) selection: largest multiple of 8 under the budget ----
    esz = jnp.dtype(sdt).itemsize
    osz = jnp.dtype(out_dtype).itemsize
    per_row = (2 * S * E2 * esz          # enc tile (double buffered)
               + 2 * P * osz             # output slab (double buffered)
               + 3 * S * D * 4           # proj + energy f32 temporaries (+ slack)
               + S * E2 * 4              # f32 copy of enc for the context reduce
               + 2 * (S + E2 + D) * 4)   # scores / weights / dec_proj etc.
    if vmem_budget_bytes is None:
        vmem_budget_bytes = 12 * 1024 * 1024   # fits v5e's 16 MiB scoped default
    bb_max = max(8, (vmem_budget_bytes // per_row) // 8 * 8)

    if B <= bb_max:
        # Whole batch fits in one tile; split once when the batch is large
        # enough so the "parallel" grid axis can use both v7x TensorCores.
        half = _round_up(pl.cdiv(B, 2), 8)
        Bb = half if (B >= 16 and half < B) else B
    else:
        Bb = bb_max
    grid_b = pl.cdiv(B, Bb)   # ragged last block allowed: no jnp.pad HBM copy

    # Safe on every generation: <= 48 MiB (v7x has 64 MiB physical VMEM),
    # >= 32 MiB (v5e default scoped limit is only 16 MiB).
    vmem_limit = int(min(max(2 * vmem_budget_bytes, 32 << 20), 48 << 20))

    out_slab = pl.pallas_call(
        _attention_kernel,
        out_shape=jax.ShapeDtypeStruct((B, P), out_dtype),
        grid_spec=pltpu.PrefetchScalarGridSpec(
            num_scalar_prefetch=0,
            grid=(grid_b,),
            in_specs=[
                # TODO(synk): add pipeline_mode=pl.Buffered(3) here if xprof
                # still shows exposed DMA after the tile sweep.
                pl.BlockSpec((Bb, S, E2), lambda b: (b, 0, 0)),   # encoder outputs
                pl.BlockSpec((Bb, D), lambda b: (b, 0)),          # pre-projected decoder (f32)
                pl.BlockSpec((E2, D), lambda b: (0, 0)),          # W_enc^T
                pl.BlockSpec((1, D), lambda b: (0, 0)),           # v row (f32)
            ],
            out_specs=pl.BlockSpec((Bb, P), lambda b: (b, 0)),    # packed slab
        ),
        compiler_params=pltpu.CompilerParams(
            # Batch grid is independent -> shards across TCs on megacore / v7x.
            dimension_semantics=("parallel",),
            vmem_limit_bytes=vmem_limit,
        ),
    )(enc_in, dec_proj, w_enc_t, v_row)

    context = out_slab[:, :E2]
    attn_weights = out_slab[:, E2:E2 + S]
    return context, attn_weights


def _reference(decoder_hidden, encoder_outputs, w_enc, w_dec, v):
    # Plain-JAX reference mirroring the PyTorch forward.
    proj_enc = jnp.einsum("bse,de->bsd", encoder_outputs, w_enc)
    proj_dec = jnp.einsum("bd,ed->be", decoder_hidden, w_dec)[:, None, :]
    energy = jnp.tanh(proj_enc + proj_dec)
    scores = jnp.einsum("bsd,od->bso", energy, v)[..., 0]
    weights = jax.nn.softmax(scores, axis=1)
    context = jnp.einsum("bs,bse->be", weights, encoder_outputs)
    return context, weights


if __name__ == "__main__":
    key = jax.random.PRNGKey(0)
    k1, k2, k3, k4, k5 = jax.random.split(key, 5)

    enc_hid_dim, dec_hid_dim = 16, 32
    B, S = 32, 16                     # B=32 -> Bb=16, grid_b=2 (exercises tiling)
    E2, D = 2 * enc_hid_dim, dec_hid_dim

    # Deterministic synthetic parameters (PyTorch Linear weight shapes: [out, in]).
    w_enc = jax.random.normal(k1, (D, E2), jnp.float32) / jnp.sqrt(E2)
    w_dec = jax.random.normal(k2, (D, D), jnp.float32) / jnp.sqrt(D)
    v_w = jax.random.normal(k3, (1, D), jnp.float32) / jnp.sqrt(D)

    decoder_hidden = jax.random.normal(k4, (B, D), jnp.float32)
    encoder_outputs = jax.random.normal(k5, (B, S, E2), jnp.float32)

    ctx, attw = attention_forward(decoder_hidden, encoder_outputs, w_enc, w_dec, v_w)
    jax.block_until_ready((ctx, attw))

    ref_ctx, ref_attw = _reference(decoder_hidden, encoder_outputs, w_enc, w_dec, v_w)
    # Tolerance allows for the EUP approximate reciprocal in the softmax
    # normalization (weights sum to 1 only within ~1e-3).
    assert ctx.shape == (B, E2) and attw.shape == (B, S)
    assert jnp.allclose(ctx, ref_ctx, atol=2e-3, rtol=2e-3), "context mismatch"
    assert jnp.allclose(attw, ref_attw, atol=2e-3, rtol=2e-3), "weights mismatch"

    print("KERNEL_OK")
</pallas_src>

<mosaic_0001>
module attributes {stable_mosaic.version = 11 : i64} {
  func.func @_attention_kernel(%arg0: i32, %arg1: memref<16x16x32xf32, #tpu.memory_space<vmem>>, %arg2: memref<16x32xf32, #tpu.memory_space<vmem>>, %arg3: memref<32x32xf32, #tpu.memory_space<vmem>>, %arg4: memref<1x32xf32, #tpu.memory_space<vmem>>, %arg5: memref<16x128xf32, #tpu.memory_space<vmem>>) attributes {dimension_semantics = [#tpu.dimension_semantics<parallel>], iteration_bounds = array<i64: 2>, scalar_prefetch = 0 : i64, scratch_operands = 0 : i64, tpu.core_type = #tpu.core_type<tc>, window_params = [{transform_indices = @transform_0, window_bounds = array<i64: 16, 16, 32>}, {transform_indices = @transform_1, window_bounds = array<i64: 16, 32>}, {pipeline_mode = #tpu.pipeline_mode<synchronous>, transform_indices = @transform_2, window_bounds = array<i64: 32, 32>}, {pipeline_mode = #tpu.pipeline_mode<synchronous>, transform_indices = @transform_3, window_bounds = array<i64: 1, 32>}, {transform_indices = @transform_4, window_bounds = array<i64: 16, 128>}]} {
    %c0 = arith.constant 0 : index
    %c0_0 = arith.constant 0 : index
    %c0_1 = arith.constant 0 : index
    %0 = vector.load %arg1[%c0, %c0_0, %c0_1] : memref<16x16x32xf32, #tpu.memory_space<vmem>>, vector<16x16x32xf32>
    %1 = vector.shape_cast %0 : vector<16x16x32xf32> to vector<256x32xf32>
    %c0_2 = arith.constant 0 : index
    %c0_3 = arith.constant 0 : index
    %2 = vector.load %arg3[%c0_2, %c0_3] : memref<32x32xf32, #tpu.memory_space<vmem>>, vector<32x32xf32>
    %cst = arith.constant dense<0.000000e+00> : vector<256x32xf32>
    %3 = tpu.matmul %1, %2, %cst {dimension_numbers = #tpu.dot_dimension_numbers<[1], [0], [0], [1], [0, 0, 1, 1], [], []>} : vector<256x32xf32>, vector<32x32xf32>, vector<256x32xf32> -> vector<256x32xf32>
    %4 = vector.shape_cast %3 : vector<256x32xf32> to vector<16x16x32xf32>
    %c0_4 = arith.constant 0 : index
    %c0_5 = arith.constant 0 : index
    %5 = vector.load %arg2[%c0_4, %c0_5] : memref<16x32xf32, #tpu.memory_space<vmem>>, vector<16x32xf32>
    %6 = vector.shape_cast %5 : vector<16x32xf32> to vector<16x1x32xf32>
    %7 = vector.broadcast %6 : vector<16x1x32xf32> to vector<16x16x32xf32>
    %8 = arith.addf %4, %7 : vector<16x16x32xf32>
    %9 = math.tanh %8 : vector<16x16x32xf32>
    %c0_6 = arith.constant 0 : index
    %c0_7 = arith.constant 0 : index
    %10 = vector.load %arg4[%c0_6, %c0_7] : memref<1x32xf32, #tpu.memory_space<vmem>>, vector<1x32xf32>
    %11 = vector.shape_cast %10 : vector<1x32xf32> to vector<1x1x32xf32>
    %12 = vector.broadcast %11 : vector<1x1x32xf32> to vector<16x16x32xf32>
    %13 = arith.mulf %9, %12 : vector<16x16x32xf32>
    %cst_8 = arith.constant dense<0.000000e+00> : vector<16x16xf32>
    %14 = vector.multi_reduction <add>, %13, %cst_8 [2] : vector<16x16x32xf32> to vector<16x16xf32>
    %cst_9 = arith.constant dense<0xFF800000> : vector<16xf32>
    %15 = vector.multi_reduction <maximumf>, %14, %cst_9 [1] : vector<16x16xf32> to vector<16xf32>
    %16 = vector.shape_cast %15 : vector<16xf32> to vector<16x1xf32>
    %17 = vector.broadcast %16 : vector<16x1xf32> to vector<16x16xf32>
    %18 = arith.subf %14, %17 : vector<16x16xf32>
    %19 = math.exp %18 : vector<16x16xf32>
    %cst_10 = arith.constant dense<0.000000e+00> : vector<16xf32>
    %20 = vector.multi_reduction <add>, %19, %cst_10 [1] : vector<16x16xf32> to vector<16xf32>
    %21 = vector.shape_cast %20 : vector<16xf32> to vector<16x1xf32>
    %22 = tpu.reciprocal %21 {approx = true} : vector<16x1xf32> -> vector<16x1xf32>
    %23 = vector.broadcast %22 : vector<16x1xf32> to vector<16x16xf32>
    %24 = arith.mulf %19, %23 : vector<16x16xf32>
    %25 = vector.shape_cast %24 : vector<16x16xf32> to vector<16x16x1xf32>
    %26 = vector.broadcast %25 : vector<16x16x1xf32> to vector<16x16x32xf32>
    %27 = arith.mulf %26, %0 : vector<16x16x32xf32>
    %cst_11 = arith.constant dense<0.000000e+00> : vector<16x32xf32>
    %28 = vector.multi_reduction <add>, %27, %cst_11 [1] : vector<16x16x32xf32> to vector<16x32xf32>
    %cst_12 = arith.constant 0.000000e+00 : f32
    %29 = vector.broadcast %cst_12 : f32 to vector<16x80xf32>
    %30 = tpu.concatenate %28, %24, %29 in 1 : vector<16x32xf32>, vector<16x16xf32>, vector<16x80xf32> -> vector<16x128xf32>
    %c0_13 = arith.constant 0 : index
    %c0_14 = arith.constant 0 : index
    %31 = vector.load %arg5[%c0_13, %c0_14] : memref<16x128xf32, #tpu.memory_space<vmem>>, vector<16x128xf32>
    tpu.vector_store %arg5[%c0_13, %c0_14], %30 {strides = array<i32>} : memref<16x128xf32, #tpu.memory_space<vmem>>, vector<16x128xf32>,
    return
  }
  func.func @transform_0(%arg0: i32) -> (i32, i32, i32) {
    %c0_i32 = arith.constant 0 : i32
    %c0_i32_0 = arith.constant 0 : i32
    %c0_i32_1 = arith.constant 0 : i32
    return %arg0, %c0_i32, %c0_i32_0 : i32, i32, i32
  }
  func.func @transform_1(%arg0: i32) -> (i32, i32) {
    %c0_i32 = arith.constant 0 : i32
    %c0_i32_0 = arith.constant 0 : i32
    return %arg0, %c0_i32 : i32, i32
  }
  func.func @transform_2(%arg0: i32) -> (i32, i32) {
    %c0_i32 = arith.constant 0 : i32
    %c0_i32_0 = arith.constant 0 : i32
    %c0_i32_1 = arith.constant 0 : i32
    return %c0_i32, %c0_i32_0 : i32, i32
  }
  func.func @transform_3(%arg0: i32) -> (i32, i32) {
    %c0_i32 = arith.constant 0 : i32
    %c0_i32_0 = arith.constant 0 : i32
    %c0_i32_1 = arith.constant 0 : i32
    return %c0_i32, %c0_i32_0 : i32, i32
  }
  func.func @transform_4(%arg0: i32) -> (i32, i32) {
    %c0_i32 = arith.constant 0 : i32
    %c0_i32_0 = arith.constant 0 : i32
    return %arg0, %c0_i32 : i32, i32
  }
}

</mosaic_0001>

<llo_original>
// kernel: tpu_custom_call.1
$region0: #{tpu_custom_call.1}
  #allocation0 [shape = 'u32[]', space=smem, size = 0x4, offset = 0x4, fixed_abs, tag = 'smem constant byte address 0x4 - core index']
  #allocation1 [shape = 'u32[144,128]{1,0:T(1,128)}', space=vmem, size = 0x12000, scoped, tag = 'internal scratch']
  %s0 = inlined_call_operand.hbm [shape: f32[32,16,32], index: 0, kind: input, shape index: {}]
  %s1 = inlined_call_operand.hbm [shape: f32[32,32], index: 1, kind: input, shape index: {}]
  %s2 = inlined_call_operand.hbm [shape: f32[32,32], index: 2, kind: input, shape index: {}]
  %s3 = inlined_call_operand.vmem [shape: f32[1,32], index: 3, kind: input, shape index: {}]
  %s4 = inlined_call_operand.hbm [shape: f32[32,128], index: 4, kind: output, shape index: {}]
  %s5 = sld [smem:[#allocation0]]
  $region61: #{tpu_custom_call.1} parent=0
    _
  %s7 = ssub.s32 1, %s5
  %s8 = scalar_select 0, %s7, %s5
  $region1: #{tpu_custom_call.1} parent=0
    #allocation2 [shape = 'u8[262144]{0}', space=vmem, size = 0x40000, scoped, tag = 'input window, operand 0']
    #allocation3 [shape = 's32[2]{0}', space=sflag, size = 0x8, scoped, tag = 'scoped memory for tpu_custom_call.1']
    #allocation4 [shape = 's32[2]{0}', space=sflag, size = 0x8, scoped, tag = 'scoped memory for tpu_custom_call.1']
    #allocation5 [shape = 'u8[16384]{0}', space=vmem, size = 0x4000, scoped, tag = 'input window, operand 1']
    #allocation6 [shape = 's32[2]{0}', space=sflag, size = 0x8, scoped, tag = 'scoped memory for tpu_custom_call.1']
    #allocation7 [shape = 'u8[16384]{0}', space=vmem, size = 0x4000, scoped, tag = 'input window, operand 2, single buffered']
    #allocation8 [shape = 'u8[16384]{0}', space=vmem, size = 0x4000, scoped, tag = 'output window, operand 0']
    %9 = vsyncpa [#allocation3], 0
    %s10 = scalar_lea.sflag [#allocation3], 1
    %11 = vsyncpa %s10, 0
    %12 = vsyncpa [#allocation6], 0
    %s13 = scalar_lea.sflag [#allocation6], 1
    %14 = vsyncpa %s13, 0
    %15 = vsyncpa [#allocation4], 0
    %s16 = scalar_lea.sflag [#allocation4], 1
    %17 = vsyncpa %s16, 0
    loop: start=0, step=1, limit=4
    $region2: #{tpu_custom_call.1} parent=1 // loop_pre_header
      _
    $region3: #{tpu_custom_call.1} parent=1 // loop_header
      %s19 = sphi 0, %s23
      %p20 = scmp.ge.s32.totalorder %s19, 4
      %s29 = sphi 0, %s31
      %s32 = sphi 0, %s29
      %s33 = sphi 0, %s32
      %s49 = sphi 0, %s33
      %s55 = sphi 0, %s57
      %s58 = sphi 0, %s55
      %s59 = sphi 0, %s58
      %s75 = sphi 0, %s59
      %s79 = sphi 0, %s79
      %s81 = sphi 0, %s79
      %s82 = sphi 0, %s81
      %s96 = sphi 0, %s82
      %s100 = sphi 0, %s100
      %s102 = sphi 0, %s100
      %s103 = sphi 0, %s102
      %s117 = sphi 0, %s103
      %s123 = sphi 0, %s125
      %s126 = sphi 0, %s123
      %s127 = sphi 0, %s126
      %s143 = sphi 0, %s127
    $region4: #{tpu_custom_call.1} parent=1 // loop_header_branch
      %22 = sbr.rel (%p20) target = $region8
    $region5: #{tpu_custom_call.1} parent=1 // loop_body
      %s24 = ssub.s32 %s19, 1
      %s25 = ssub.s32 %s19, 2
      %s26 = sadd.s32 %s19, 1
      %s27 = ssub.s32 %s19, %s26
      %p28 = scmp.eq.s32.totalorder %s27, 0
      %s30 = sadd.s32 %s29, 1
      %s31 = scalar_select %p28, %s29, %s30
      %p34 = pneg %p28
      %p35 = scmp.eq.s32.totalorder %s19, 1
      %p36 = por %p34, %p35
      %p37 = scmp.ne.s32.totalorder %s29, %s32
      %p38 = scmp.eq.s32.totalorder %s19, 0
      %p39 = por %p37, %p38
      %p40 = scmp.ne.s32.totalorder %s29, %s32
      %p41 = scmp.eq.s32.totalorder %s24, 1
      %p42 = por %p40, %p41
      %p43 = scmp.ne.s32.totalorder %s32, %s33
      %p44 = scmp.eq.s32.totalorder %s24, 0
      %p45 = por %p43, %p44
      %p46 = scmp.ne.s32.totalorder %s32, %s33
      %p47 = scmp.eq.s32.totalorder %s25, 1
      %p48 = por %p46, %p47
      %p50 = scmp.ne.s32.totalorder %s33, %s49
      %p51 = scmp.eq.s32.totalorder %s25, 0
      %p52 = por %p50, %p51
      %s53 = ssub.s32 %s19, %s26
      %p54 = scmp.eq.s32.totalorder %s53, 0
      %s56 = sadd.s32 %s55, 1
      %s57 = scalar_select %p54, %s55, %s56
      %p60 = pneg %p54
      %p61 = scmp.eq.s32.totalorder %s19, 1
      %p62 = por %p60, %p61
      %p63 = scmp.ne.s32.totalorder %s55, %s58
      %p64 = scmp.eq.s32.totalorder %s19, 0
      %p65 = por %p63, %p64
      %p66 = scmp.ne.s32.totalorder %s55, %s58
      %p67 = scmp.eq.s32.totalorder %s24, 1
      %p68 = por %p66, %p67
      %p69 = scmp.ne.s32.totalorder %s58, %s59
      %p70 = scmp.eq.s32.totalorder %s24, 0
      %p71 = por %p69, %p70
      %p72 = scmp.ne.s32.totalorder %s58, %s59
      %p73 = scmp.eq.s32.totalorder %s25, 1
      %p74 = por %p72, %p73
      %p76 = scmp.ne.s32.totalorder %s59, %s75
      %p77 = scmp.eq.s32.totalorder %s25, 0
      %p78 = por %p76, %p77
      %s80 = sadd.s32 %s79, 1
      %p83 = scmp.eq.s32.totalorder %s19, 1
      %p84 = scmp.ne.s32.totalorder %s79, %s81
      %p85 = scmp.eq.s32.totalorder %s19, 0
      %p86 = por %p84, %p85
      %p87 = scmp.ne.s32.totalorder %s79, %s81
      %p88 = scmp.eq.s32.totalorder %s24, 1
      %p89 = por %p87, %p88
      %p90 = scmp.ne.s32.totalorder %s81, %s82
      %p91 = scmp.eq.s32.totalorder %s24, 0
      %p92 = por %p90, %p91
      %p93 = scmp.ne.s32.totalorder %s81, %s82
      %p94 = scmp.eq.s32.totalorder %s25, 1
      %p95 = por %p93, %p94
      %p97 = scmp.ne.s32.totalorder %s82, %s96
      %p98 = scmp.eq.s32.totalorder %s25, 0
      %p99 = por %p97, %p98
      %s101 = sadd.s32 %s100, 1
      %p104 = scmp.eq.s32.totalorder %s19, 1
      %p105 = scmp.ne.s32.totalorder %s100, %s102
      %p106 = scmp.eq.s32.totalorder %s19, 0
      %p107 = por %p105, %p106
      %p108 = scmp.ne.s32.totalorder %s100, %s102
      %p109 = scmp.eq.s32.totalorder %s24, 1
      %p110 = por %p108, %p109
      %p111 = scmp.ne.s32.totalorder %s102, %s103
      %p112 = scmp.eq.s32.totalorder %s24, 0
      %p113 = por %p111, %p112
      %p114 = scmp.ne.s32.totalorder %s102, %s103
      %p115 = scmp.eq.s32.totalorder %s25, 1
      %p116 = por %p114, %p115
      %p118 = scmp.ne.s32.totalorder %s103, %s117
      %p119 = scmp.eq.s32.totalorder %s25, 0
      %p120 = por %p118, %p119
      %s121 = ssub.s32 %s19, %s26
      %p122 = scmp.eq.s32.totalorder %s121, 0
      %s124 = sadd.s32 %s123, 1
      %s125 = scalar_select %p122, %s123, %s124
      %p128 = pneg %p122
      %p129 = scmp.eq.s32.totalorder %s19, 1
      %p130 = por %p128, %p129
      %p131 = scmp.ne.s32.totalorder %s123, %s126
      %p132 = scmp.eq.s32.totalorder %s19, 0
      %p133 = por %p131, %p132
      %p134 = scmp.ne.s32.totalorder %s123, %s126
      %p135 = scmp.eq.s32.totalorder %s24, 1
      %p136 = por %p134, %p135
      %p137 = scmp.ne.s32.totalorder %s126, %s127
      %p138 = scmp.eq.s32.totalorder %s24, 0
      %p139 = por %p137, %p138
      %p140 = scmp.ne.s32.totalorder %s126, %s127
      %p141 = scmp.eq.s32.totalorder %s25, 1
      %p142 = por %p140, %p141
      %p144 = scmp.ne.s32.totalorder %s127, %s143
      %p145 = scmp.eq.s32.totalorder %s25, 0
      %p146 = por %p144, %p145
      %p147 = scmp.le.s32.totalorder 1, %s19
      %p148 = scmp.lt.s32.totalorder %s19, 3
      %p149 = pnand %p147, %p148
      %p150 = pneg %p149
      // Predicated region
      $region9: #{tpu_custom_call.1} parent=5 // pred_check
        _
      $region10: #{tpu_custom_call.1} parent=5 // pred_check_branch
        %152 = sbr.rel (%p149) target = $region12
      $region11: #{tpu_custom_call.1} parent=5 // pred_region
        %s153 = ssub.s32 %s19, 1
        // Predicated region
        $region13: #{tpu_custom_call.1} parent=11 // pred_check
          %p154 = pneg %p92
        $region14: #{tpu_custom_call.1} parent=11 // pred_check_branch
          %156 = sbr.rel (%p154) target = $region16
        $region15: #{tpu_custom_call.1} parent=11 // pred_region
          %s158 = ssub.s32 512, 512
          %159 = vsyncadd [#allocation6], %s158
          %s160 = sshll.u32 [#allocation7], 4
          %s161 = int_to_ptr.vmem [resolvable:$true] %s160
          %166 = dma.hbm_to_vmem [thread:$0]  %s2, 512, %s161, [#allocation6], 128, 128, 8
        $region16: #{tpu_custom_call.1} parent=11 // pred_fallthru
          _
        // Predicated region
        $region17: #{tpu_custom_call.1} parent=11 // pred_check
          %p167 = pneg %p113
        $region18: #{tpu_custom_call.1} parent=11 // pred_check_branch
          %169 = sbr.rel (%p167) target = $region20
        $region19: #{tpu_custom_call.1} parent=11 // pred_region
          _
        $region20: #{tpu_custom_call.1} parent=11 // pred_fallthru
          _
      $region12: #{tpu_custom_call.1} parent=5 // pred_fallthru
        _
      %p170 = scmp.lt.s32.totalorder %s19, 2
      // Predicated region
      $region21: #{tpu_custom_call.1} parent=5 // pred_check
        %p171 = pneg %p170
      $region22: #{tpu_custom_call.1} parent=5 // pred_check_branch
        %173 = sbr.rel (%p171) target = $region24
      $region23: #{tpu_custom_call.1} parent=5 // pred_region
        // Predicated region
        $region25: #{tpu_custom_call.1} parent=23 // pred_check
          %p174 = pneg %p39
        $region26: #{tpu_custom_call.1} parent=23 // pred_check_branch
          %176 = sbr.rel (%p174) target = $region28
        $region27: #{tpu_custom_call.1} parent=23 // pred_region
          %s177 = sand.u32 %s29, 1
          %s178 = scalar_lea.sflag [#allocation3], %s177
          %s179 = sand.u32 %s29, 1
          %s180 = smul.addr %s179, 256
          %s181 = scalar_lea.vmem [#allocation2], %s180
          %s182 = smul.u32 16, %s19
          %s184 = ssub.s32 4096, 4096
          %185 = vsyncadd %s178, %s184
          %s186 = smul.addr %s182, 2
          %s187 = smul.addr %s186, 128
          %s188 = scalar_lea.hbm %s0, %s187
          %s189 = sshll.u32 %s181, 4
          %s190 = int_to_ptr.vmem [resolvable:$true] %s189
          %195 = dma.hbm_to_vmem [thread:$0]  %s188, 4096, %s190, %s178, 128, 128, 8
        $region28: #{tpu_custom_call.1} parent=23 // pred_fallthru
          _
        // Predicated region
        $region29: #{tpu_custom_call.1} parent=23 // pred_check
          %p196 = pneg %p65
        $region30: #{tpu_custom_call.1} parent=23 // pred_check_branch
          %198 = sbr.rel (%p196) target = $region32
        $region31: #{tpu_custom_call.1} parent=23 // pred_region
          %s199 = sand.u32 %s19, 1
          %s200 = scalar_lea.sflag [#allocation6], %s199
          %s201 = sand.u32 %s55, 1
          %s202 = smul.addr %s201, 16
          %s203 = scalar_lea.vmem [#allocation5], %s202
          %s204 = smul.u32 2, %s19
          %s206 = ssub.s32 256, 256
          %207 = vsyncadd %s200, %s206
          %s208 = smul.addr %s204, 128
          %s209 = scalar_lea.hbm %s1, %s208
          %s210 = sshll.u32 %s203, 4
          %s211 = int_to_ptr.vmem [resolvable:$true] %s210
          %216 = dma.hbm_to_vmem [thread:$0]  %s209, 256, %s211, %s200, 128, 128, 8
        $region32: #{tpu_custom_call.1} parent=23 // pred_fallthru
          _
      $region24: #{tpu_custom_call.1} parent=5 // pred_fallthru
        _
      %p217 = scmp.le.s32.totalorder 1, %s19
      %p218 = scmp.lt.s32.totalorder %s19, 3
      %p219 = pnand %p217, %p218
      %p220 = pneg %p219
      // Predicated region
      $region33: #{tpu_custom_call.1} parent=5 // pred_check
        _
      $region34: #{tpu_custom_call.1} parent=5 // pred_check_branch
        %222 = sbr.rel (%p219) target = $region36
      $region35: #{tpu_custom_call.1} parent=5 // pred_region
        %s223 = ssub.s32 %s19, 1
        %s224 = sand.u32 %s32, 1
        %s225 = scalar_lea.sflag [#allocation3], %s224
        %s226 = sand.u32 %s32, 1
        %s227 = smul.addr %s226, 256
        %s228 = scalar_lea.vmem [#allocation2], %s227
        // Predicated region
        $region37: #{tpu_custom_call.1} parent=35 // pred_check
          %p229 = pneg %p45
        $region38: #{tpu_custom_call.1} parent=35 // pred_check_branch
          %231 = sbr.rel (%p229) target = $region40
        $region39: #{tpu_custom_call.1} parent=35 // pred_region
          %232 = dma.done %s225, 4096
        $region40: #{tpu_custom_call.1} parent=35 // pred_fallthru
          _
        %s233 = sand.u32 %s24, 1
        %s234 = scalar_lea.sflag [#allocation6], %s233
        %s235 = sand.u32 %s58, 1
        %s236 = smul.addr %s235, 16
        %s237 = scalar_lea.vmem [#allocation5], %s236
        // Predicated region
        $region41: #{tpu_custom_call.1} parent=35 // pred_check
          %p238 = pneg %p71
        $region42: #{tpu_custom_call.1} parent=35 // pred_check_branch
          %240 = sbr.rel (%p238) target = $region44
        $region43: #{tpu_custom_call.1} parent=35 // pred_region
          %241 = dma.done %s234, 256
        $region44: #{tpu_custom_call.1} parent=35 // pred_fallthru
          _
        // Predicated region
        $region45: #{tpu_custom_call.1} parent=35 // pred_check
          %p242 = pneg %p92
        $region46: #{tpu_custom_call.1} parent=35 // pred_check_branch
          %244 = sbr.rel (%p242) target = $region48
        $region47: #{tpu_custom_call.1} parent=35 // pred_region
          %245 = dma.done [#allocation6], 512
        $region48: #{tpu_custom_call.1} parent=35 // pred_fallthru
          _
        %s246 = sand.u32 %s32, 1
        %s247 = scalar_lea.sflag [#allocation3], %s246
        %s248 = sand.u32 %s32, 1
        %s249 = smul.addr %s248, 256
        %s250 = scalar_lea.vmem [#allocation2], %s249
        %p251 = pneg %p45
        %p252 = pneg %p42
        %s253 = sand.u32 %s24, 1
        %s254 = scalar_lea.sflag [#allocation6], %s253
        %s255 = sand.u32 %s58, 1
        %s256 = smul.addr %s255, 16
        %s257 = scalar_lea.vmem [#allocation5], %s256
        %p258 = pneg %p71
        %p259 = pneg %p68
        %p260 = pneg %p92
        %p261 = pneg %p89
        %p262 = pneg %p113
        %p263 = pneg %p110
        %p264 = pneg %p139
        %p265 = pneg %p136
        %s266 = sand.u32 %s126, 1
        %s267 = scalar_lea.sflag [#allocation4], %s266
        %s268 = sand.u32 %s126, 1
        %s269 = smul.addr %s268, 16
        %s270 = scalar_lea.vmem [#allocation8], %s269
        %s271 = smul.u32 16, %s24
        %s272 = smul.u32 2, %s24
        %s273 = smul.u32 2, %s24
        %v274 = vld [vmem:[%s228] sm:$0xff]
        %v275 = vld [vmem:[%s228 + $0x8] sm:$0xff]
        %v276 = vld [vmem:[%s228 + $0x10] sm:$0xff]
        %v277 = vld [vmem:[%s228 + $0x18] sm:$0xff]
        %v278 = vld [vmem:[%s228 + $0x20] sm:$0xff]
        %v279 = vld [vmem:[%s228 + $0x28] sm:$0xff]
        %v280 = vld [vmem:[%s228 + $0x30] sm:$0xff]
        %v281 = vld [vmem:[%s228 + $0x38] sm:$0xff]
        %v282 = vld [vmem:[%s228 + $0x40] sm:$0xff]
        %v283 = vld [vmem:[%s228 + $0x48] sm:$0xff]
        %v284 = vld [vmem:[%s228 + $0x50] sm:$0xff]
        %v285 = vld [vmem:[%s228 + $0x58] sm:$0xff]
        %v286 = vld [vmem:[%s228 + $0x60] sm:$0xff]
        %v287 = vld [vmem:[%s228 + $0x68] sm:$0xff]
        %v288 = vld [vmem:[%s228 + $0x70] sm:$0xff]
        %v289 = vld [vmem:[%s228 + $0x78] sm:$0xff]
        %v290 = vld [vmem:[%s228 + $0x80] sm:$0xff]
        %v291 = vld [vmem:[%s228 + $0x88] sm:$0xff]
        %v292 = vld [vmem:[%s228 + $0x90] sm:$0xff]
        %v293 = vld [vmem:[%s228 + $0x98] sm:$0xff]
        %v294 = vld [vmem:[%s228 + $0xa0] sm:$0xff]
        %v295 = vld [vmem:[%s228 + $0xa8] sm:$0xff]
        %v296 = vld [vmem:[%s228 + $0xb0] sm:$0xff]
        %v297 = vld [vmem:[%s228 + $0xb8] sm:$0xff]
        %v298 = vld [vmem:[%s228 + $0xc0] sm:$0xff]
        %v299 = vld [vmem:[%s228 + $0xc8] sm:$0xff]
        %v300 = vld [vmem:[%s228 + $0xd0] sm:$0xff]
        %v301 = vld [vmem:[%s228 + $0xd8] sm:$0xff]
        %v302 = vld [vmem:[%s228 + $0xe0] sm:$0xff]
        %v303 = vld [vmem:[%s228 + $0xe8] sm:$0xff]
        %v304 = vld [vmem:[%s228 + $0xf0] sm:$0xff]
        %v305 = vld [vmem:[%s228 + $0xf8] sm:$0xff]
        %v306 = vld [vmem:[#allocation7] sm:$0xff]
        %v307 = vld [vmem:[#allocation7 + $0x8] sm:$0xff]
        %v308 = vld [vmem:[#allocation7 + $0x10] sm:$0xff]
        %v309 = vld [vmem:[#allocation7 + $0x18] sm:$0xff]
        %vm310 = vcmask 261120
        %v312 = vsel %vm310, %v274, 0
        %v315 = vsel %vm310, %v275, 0
        %v318 = vsel %vm310, %v276, 0
        %v321 = vsel %vm310, %v277, 0
        %v324 = vsel %vm310, %v278, 0
        %v327 = vsel %vm310, %v279, 0
        %v330 = vsel %vm310, %v280, 0
        %v333 = vsel %vm310, %v281, 0
        %v336 = vsel %vm310, %v282, 0
        %v339 = vsel %vm310, %v283, 0
        %v342 = vsel %vm310, %v284, 0
        %v345 = vsel %vm310, %v285, 0
        %v348 = vsel %vm310, %v286, 0
        %v351 = vsel %vm310, %v287, 0
        %v354 = vsel %vm310, %v288, 0
        %v357 = vsel %vm310, %v289, 0
        %v360 = vsel %vm310, %v290, 0
        %v363 = vsel %vm310, %v291, 0
        %v366 = vsel %vm310, %v292, 0
        %v369 = vsel %vm310, %v293, 0
        %v372 = vsel %vm310, %v294, 0
        %v375 = vsel %vm310, %v295, 0
        %v378 = vsel %vm310, %v296, 0
        %v381 = vsel %vm310, %v297, 0
        %v384 = vsel %vm310, %v298, 0
        %v387 = vsel %vm310, %v299, 0
        %v390 = vsel %vm310, %v300, 0
        %v393 = vsel %vm310, %v301, 0
        %v396 = vsel %vm310, %v302, 0
        %v399 = vsel %vm310, %v303, 0
        %v402 = vsel %vm310, %v304, 0
        %v405 = vsel %vm310, %v305, 0
        %407 = vmatprep.subr.mxu0 0.0
        %408 = vmatpush1.msra.mxu0 0.0
        %409 = vmatprep.subr.mxu0 0.0
        %410 = vmatpush1.msra.mxu0 0.0
        %411 = vmatprep.subr.mxu0 0.0
        %412 = vmatpush1.msra.mxu0 0.0
        %413 = vmatprep.subr.mxu0 0.0
        %414 = vmatpush1.msra.mxu0 0.0
        %415 = vmatprep.subr.mxu0 0.0
        %416 = vmatpush1.msra.mxu0 0.0
        %417 = vmatprep.subr.mxu0 0.0
        %418 = vmatpush1.msra.mxu0 0.0
        %419 = vmatprep.subr.mxu0 0.0
        %420 = vmatpush1.msra.mxu0 0.0
        %421 = vmatprep.subr.mxu0 0.0
        %422 = vmatpush1.msra.mxu0 0.0
        %423 = vmatprep.subr.mxu0 0.0
        %424 = vmatpush1.msra.mxu0 0.0
        %425 = vmatprep.subr.mxu0 0.0
        %426 = vmatpush1.msra.mxu0 0.0
        %427 = vmatprep.subr.mxu0 0.0
        %428 = vmatpush1.msra.mxu0 0.0
        %429 = vmatprep.subr.mxu0 0.0
        %430 = vmatpush1.msra.mxu0 0.0
        %431 = vmatprep.subr.mxu0 0.0
        %432 = vmatpush1.msra.mxu0 %v309
        %433 = vmatprep.subr.mxu0 0.0
        %434 = vmatpush1.msra.mxu0 %v308
        %435 = vmatprep.subr.mxu0 0.0
        %436 = vmatpush1.msra.mxu0 %v307
        %437 = vmatprep.subr.mxu0 0.0
        %438 = vmatpush1.msra.mxu0 %v306
        %439 = vmatprep.subr.mxu0 0.0
        %440 = vmatpush2.msra.mxu0 0.0
        %441 = vmatprep.subr.mxu0 0.0
        %442 = vmatpush2.msra.mxu0 0.0
        %443 = vmatprep.subr.mxu0 0.0
        %444 = vmatpush2.msra.mxu0 0.0
        %445 = vmatprep.subr.mxu0 0.0
        %446 = vmatpush2.msra.mxu0 0.0
        %447 = vmatprep.subr.mxu0 0.0
        %448 = vmatpush2.msra.mxu0 0.0
        %449 = vmatprep.subr.mxu0 0.0
        %450 = vmatpush2.msra.mxu0 0.0
        %451 = vmatprep.subr.mxu0 0.0
        %452 = vmatpush2.msra.mxu0 0.0
        %453 = vmatprep.subr.mxu0 0.0
        %454 = vmatpush2.msra.mxu0 0.0
        %455 = vmatprep.subr.mxu0 0.0
        %456 = vmatpush2.msra.mxu0 0.0
        %457 = vmatprep.subr.mxu0 0.0
        %458 = vmatpush2.msra.mxu0 0.0
        %459 = vmatprep.subr.mxu0 0.0
        %460 = vmatpush2.msra.mxu0 0.0
        %461 = vmatprep.subr.mxu0 0.0
        %462 = vmatpush2.msra.mxu0 0.0
        %463 = vmatprep.subr.mxu0 0.0
        %464 = vmatpush2.msra.mxu0 0.0
        %465 = vmatprep.subr.mxu0 0.0
        %466 = vmatpush2.msra.mxu0 0.0
        %467 = vmatprep.subr.mxu0 0.0
        %468 = vmatpush2.msra.mxu0 0.0
        %469 = vmatprep.subr.mxu0 0.0
        %470 = vmatpush2.msra.mxu0 0.0
        %471 = vmatprep.mubr.f32.mxu0 0.0
        %472 = vmatmul.mubr.f32.gmra.mxu0 %v312
        %v473 = vpop.f32.mrf.mxu0
        %v474 = vadd.f32 0.0, %v473
        %v475 = vpop.f32.mrf.mxu0
        %476 = vmatprep.mubr.f32.mxu0 0.0
        %477 = vmatmul.mubr.f32.gmra.mxu0 %v315
        %v478 = vpop.f32.mrf.mxu0
        %v479 = vadd.f32 0.0, %v478
        %v480 = vpop.f32.mrf.mxu0
        %481 = vmatprep.mubr.f32.mxu0 0.0
        %482 = vmatmul.mubr.f32.gmra.mxu0 %v318
        %v483 = vpop.f32.mrf.mxu0
        %v484 = vadd.f32 0.0, %v483
        %v485 = vpop.f32.mrf.mxu0
        %486 = vmatprep.mubr.f32.mxu0 0.0
        %487 = vmatmul.mubr.f32.gmra.mxu0 %v321
        %v488 = vpop.f32.mrf.mxu0
        %v489 = vadd.f32 0.0, %v488
        %v490 = vpop.f32.mrf.mxu0
        %491 = vmatprep.mubr.f32.mxu0 0.0
        %492 = vmatmul.mubr.f32.gmra.mxu0 %v324
        %v493 = vpop.f32.mrf.mxu0
        %v494 = vadd.f32 0.0, %v493
        %v495 = vpop.f32.mrf.mxu0
        %496 = vmatprep.mubr.f32.mxu0 0.0
        %497 = vmatmul.mubr.f32.gmra.mxu0 %v327
        %v498 = vpop.f32.mrf.mxu0
        %v499 = vadd.f32 0.0, %v498
        %v500 = vpop.f32.mrf.mxu0
        %501 = vmatprep.mubr.f32.mxu0 0.0
        %502 = vmatmul.mubr.f32.gmra.mxu0 %v330
        %v503 = vpop.f32.mrf.mxu0
        %v504 = vadd.f32 0.0, %v503
        %v505 = vpop.f32.mrf.mxu0
        %506 = vmatprep.mubr.f32.mxu0 0.0
        %507 = vmatmul.mubr.f32.gmra.mxu0 %v333
        %v508 = vpop.f32.mrf.mxu0
        %v509 = vadd.f32 0.0, %v508
        %v510 = vpop.f32.mrf.mxu0
        %511 = vmatprep.mubr.f32.mxu0 0.0
        %512 = vmatmul.mubr.f32.gmra.mxu0 %v336
        %v513 = vpop.f32.mrf.mxu0
        %v514 = vadd.f32 0.0, %v513
        %v515 = vpop.f32.mrf.mxu0
        %516 = vmatprep.mubr.f32.mxu0 0.0
        %517 = vmatmul.mubr.f32.gmra.mxu0 %v339
        %v518 = vpop.f32.mrf.mxu0
        %v519 = vadd.f32 0.0, %v518
        %v520 = vpop.f32.mrf.mxu0
        %521 = vmatprep.mubr.f32.mxu0 0.0
        %522 = vmatmul.mubr.f32.gmra.mxu0 %v342
        %v523 = vpop.f32.mrf.mxu0
        %v524 = vadd.f32 0.0, %v523
        %v525 = vpop.f32.mrf.mxu0
        %526 = vmatprep.mubr.f32.mxu0 0.0
        %527 = vmatmul.mubr.f32.gmra.mxu0 %v345
        %v528 = vpop.f32.mrf.mxu0
        %v529 = vadd.f32 0.0, %v528
        %v530 = vpop.f32.mrf.mxu0
        %531 = vmatprep.mubr.f32.mxu0 0.0
        %532 = vmatmul.mubr.f32.gmra.mxu0 %v348
        %v533 = vpop.f32.mrf.mxu0
        %v534 = vadd.f32 0.0, %v533
        %v535 = vpop.f32.mrf.mxu0
        %536 = vmatprep.mubr.f32.mxu0 0.0
        %537 = vmatmul.mubr.f32.gmra.mxu0 %v351
        %v538 = vpop.f32.mrf.mxu0
        %v539 = vadd.f32 0.0, %v538
        %v540 = vpop.f32.mrf.mxu0
        %541 = vmatprep.mubr.f32.mxu0 0.0
        %542 = vmatmul.mubr.f32.gmra.mxu0 %v354
        %v543 = vpop.f32.mrf.mxu0
        %v544 = vadd.f32 0.0, %v543
        %v545 = vpop.f32.mrf.mxu0
        %546 = vmatprep.mubr.f32.mxu0 0.0
        %547 = vmatmul.mubr.f32.gmra.mxu0 %v357
        %v548 = vpop.f32.mrf.mxu0
        %v549 = vadd.f32 0.0, %v548
        %v550 = vpop.f32.mrf.mxu0
        %551 = vmatprep.mubr.f32.mxu0 0.0
        %552 = vmatmul.mubr.f32.gmra.mxu0 %v360
        %v553 = vpop.f32.mrf.mxu0
        %v554 = vadd.f32 0.0, %v553
        %v555 = vpop.f32.mrf.mxu0
        %556 = vmatprep.mubr.f32.mxu0 0.0
        %557 = vmatmul.mubr.f32.gmra.mxu0 %v363
        %v558 = vpop.f32.mrf.mxu0
        %v559 = vadd.f32 0.0, %v558
        %v560 = vpop.f32.mrf.mxu0
        %561 = vmatprep.mubr.f32.mxu0 0.0
        %562 = vmatmul.mubr.f32.gmra.mxu0 %v366
        %v563 = vpop.f32.mrf.mxu0
        %v564 = vadd.f32 0.0, %v563
        %v565 = vpop.f32.mrf.mxu0
        %566 = vmatprep.mubr.f32.mxu0 0.0
        %567 = vmatmul.mubr.f32.gmra.mxu0 %v369
        %v568 = vpop.f32.mrf.mxu0
        %v569 = vadd.f32 0.0, %v568
        %v570 = vpop.f32.mrf.mxu0
        %571 = vmatprep.mubr.f32.mxu0 0.0
        %572 = vmatmul.mubr.f32.gmra.mxu0 %v372
        %v573 = vpop.f32.mrf.mxu0
        %v574 = vadd.f32 0.0, %v573
        %v575 = vpop.f32.mrf.mxu0
        %576 = vmatprep.mubr.f32.mxu0 0.0
        %577 = vmatmul.mubr.f32.gmra.mxu0 %v375
        %v578 = vpop.f32.mrf.mxu0
        %v579 = vadd.f32 0.0, %v578
        %v580 = vpop.f32.mrf.mxu0
        %581 = vmatprep.mubr.f32.mxu0 0.0
        %582 = vmatmul.mubr.f32.gmra.mxu0 %v378
        %v583 = vpop.f32.mrf.mxu0
        %v584 = vadd.f32 0.0, %v583
        %v585 = vpop.f32.mrf.mxu0
        %586 = vmatprep.mubr.f32.mxu0 0.0
        %587 = vmatmul.mubr.f32.gmra.mxu0 %v381
        %v588 = vpop.f32.mrf.mxu0
        %v589 = vadd.f32 0.0, %v588
        %v590 = vpop.f32.mrf.mxu0
        %591 = vmatprep.mubr.f32.mxu0 0.0
        %592 = vmatmul.mubr.f32.gmra.mxu0 %v384
        %v593 = vpop.f32.mrf.mxu0
        %v594 = vadd.f32 0.0, %v593
        %v595 = vpop.f32.mrf.mxu0
        %596 = vmatprep.mubr.f32.mxu0 0.0
        %597 = vmatmul.mubr.f32.gmra.mxu0 %v387
        %v598 = vpop.f32.mrf.mxu0
        %v599 = vadd.f32 0.0, %v598
        %v600 = vpop.f32.mrf.mxu0
        %601 = vmatprep.mubr.f32.mxu0 0.0
        %602 = vmatmul.mubr.f32.gmra.mxu0 %v390
        %v603 = vpop.f32.mrf.mxu0
        %v604 = vadd.f32 0.0, %v603
        %v605 = vpop.f32.mrf.mxu0
        %606 = vmatprep.mubr.f32.mxu0 0.0
        %607 = vmatmul.mubr.f32.gmra.mxu0 %v393
        %v608 = vpop.f32.mrf.mxu0
        %v609 = vadd.f32 0.0, %v608
        %v610 = vpop.f32.mrf.mxu0
        %611 = vmatprep.mubr.f32.mxu0 0.0
        %612 = vmatmul.mubr.f32.gmra.mxu0 %v396
        %v613 = vpop.f32.mrf.mxu0
        %v614 = vadd.f32 0.0, %v613
        %v615 = vpop.f32.mrf.mxu0
        %616 = vmatprep.mubr.f32.mxu0 0.0
        %617 = vmatmul.mubr.f32.gmra.mxu0 %v399
        %v618 = vpop.f32.mrf.mxu0
        %v619 = vadd.f32 0.0, %v618
        %v620 = vpop.f32.mrf.mxu0
        %621 = vmatprep.mubr.f32.mxu0 0.0
        %622 = vmatmul.mubr.f32.gmra.mxu0 %v402
        %v623 = vpop.f32.mrf.mxu0
        %v624 = vadd.f32 0.0, %v623
        %v625 = vpop.f32.mrf.mxu0
        %626 = vmatprep.mubr.f32.mxu0 0.0
        %627 = vmatmul.mubr.f32.gmra.mxu0 %v405
        %v628 = vpop.f32.mrf.mxu0
        %v629 = vadd.f32 0.0, %v628
        %v630 = vpop.f32.mrf.mxu0
        %631 = vdwg.mxu0
        %v632 = vld [vmem:[%s237] sm:$0xff]
        %v633 = vld [vmem:[%s237 + $0x8] sm:$0xff]
        %v636 = vcombine.high %v632, %v632
        %v638 = vunpack.c.l.s4 1966171168
        %v639 = vunpack.c.0.s8 %v638
        %v640 = vlaneseq
        %v641 = vshrl.u32 %v640, 7
        %v642 = vsub.s32 %v639, %v641
        %v643 = vrot.slane %v632, %v642
        %v645 = vunpack.c.l.s4 1966171168
        %v646 = vunpack.c.0.s8 %v645
        %v647 = vlaneseq
        %v648 = vshrl.u32 %v647, 7
        %v649 = vsub.s32 %v646, %v648
        %v650 = vrot.slane %v636, %v649
        %v651 = vcombine.high %v643, %v643
        %v652 = vcombine.high %v650, %v650
        %v654 = vunpack.c.l.s4 1966171168
        %v655 = vunpack.c.0.s8 %v654
        %v656 = vlaneseq
        %v657 = vshrl.u32 %v656, 7
        %v658 = vsub.s32 %v655, %v657
        %v659 = vrot.slane %v643, %v658
        %v661 = vunpack.c.l.s4 1966171168
        %v662 = vunpack.c.0.s8 %v661
        %v663 = vlaneseq
        %v664 = vshrl.u32 %v663, 7
        %v665 = vsub.s32 %v662, %v664
        %v666 = vrot.slane %v650, %v665
        %v668 = vunpack.c.l.s4 1966171168
        %v669 = vunpack.c.0.s8 %v668
        %v670 = vlaneseq
        %v671 = vshrl.u32 %v670, 7
        %v672 = vsub.s32 %v669, %v671
        %v673 = vrot.slane %v651, %v672
        %v675 = vunpack.c.l.s4 1966171168
        %v676 = vunpack.c.0.s8 %v675
        %v677 = vlaneseq
        %v678 = vshrl.u32 %v677, 7
        %v679 = vsub.s32 %v676, %v678
        %v680 = vrot.slane %v652, %v679
        %v681 = vcombine.high %v659, %v659
        %v682 = vcombine.high %v666, %v666
        %v683 = vcombine.high %v673, %v673
        %v684 = vcombine.high %v680, %v680
        %v685 = vcombine.high %v633, %v633
        %v687 = vunpack.c.l.s4 1966171168
        %v688 = vunpack.c.0.s8 %v687
        %v689 = vlaneseq
        %v690 = vshrl.u32 %v689, 7
        %v691 = vsub.s32 %v688, %v690
        %v692 = vrot.slane %v633, %v691
        %v694 = vunpack.c.l.s4 1966171168
        %v695 = vunpack.c.0.s8 %v694
        %v696 = vlaneseq
        %v697 = vshrl.u32 %v696, 7
        %v698 = vsub.s32 %v695, %v697
        %v699 = vrot.slane %v685, %v698
        %v700 = vcombine.high %v692, %v692
        %v701 = vcombine.high %v699, %v699
        %v703 = vunpack.c.l.s4 1966171168
        %v704 = vunpack.c.0.s8 %v703
        %v705 = vlaneseq
        %v706 = vshrl.u32 %v705, 7
        %v707 = vsub.s32 %v704, %v706
        %v708 = vrot.slane %v692, %v707
        %v710 = vunpack.c.l.s4 1966171168
        %v711 = vunpack.c.0.s8 %v710
        %v712 = vlaneseq
        %v713 = vshrl.u32 %v712, 7
        %v714 = vsub.s32 %v711, %v713
        %v715 = vrot.slane %v699, %v714
        %v717 = vunpack.c.l.s4 1966171168
        %v718 = vunpack.c.0.s8 %v717
        %v719 = vlaneseq
        %v720 = vshrl.u32 %v719, 7
        %v721 = vsub.s32 %v718, %v720
        %v722 = vrot.slane %v700, %v721
        %v724 = vunpack.c.l.s4 1966171168
        %v725 = vunpack.c.0.s8 %v724
        %v726 = vlaneseq
        %v727 = vshrl.u32 %v726, 7
        %v728 = vsub.s32 %v725, %v727
        %v729 = vrot.slane %v701, %v728
        %v730 = vcombine.high %v708, %v708
        %v731 = vcombine.high %v715, %v715
        %v732 = vcombine.high %v722, %v722
        %v733 = vcombine.high %v729, %v729
        %v734 = vlaneseq
        %v735 = vshrl.u32 %v734, 7
        %v736 = vsub.s32 0, %v735
        %v737 = vrot.slane %v659, %v736
        %v738 = vlaneseq
        %v739 = vshrl.u32 %v738, 7
        %v740 = vsub.s32 0, %v739
        %v741 = vrot.slane %v673, %v740
        %v742 = vlaneseq
        %v743 = vshrl.u32 %v742, 7
        %v744 = vsub.s32 0, %v743
        %v745 = vrot.slane %v681, %v744
        %v746 = vlaneseq
        %v747 = vshrl.u32 %v746, 7
        %v748 = vsub.s32 0, %v747
        %v749 = vrot.slane %v683, %v748
        %v750 = vlaneseq
        %v751 = vshrl.u32 %v750, 7
        %v752 = vsub.s32 0, %v751
        %v753 = vrot.slane %v666, %v752
        %v754 = vlaneseq
        %v755 = vshrl.u32 %v754, 7
        %v756 = vsub.s32 0, %v755
        %v757 = vrot.slane %v680, %v756
        %v758 = vlaneseq
        %v759 = vshrl.u32 %v758, 7
        %v760 = vsub.s32 0, %v759
        %v761 = vrot.slane %v682, %v760
        %v762 = vlaneseq
        %v763 = vshrl.u32 %v762, 7
        %v764 = vsub.s32 0, %v763
        %v765 = vrot.slane %v684, %v764
        %v766 = vlaneseq
        %v767 = vshrl.u32 %v766, 7
        %v768 = vsub.s32 0, %v767
        %v769 = vrot.slane %v708, %v768
        %v770 = vlaneseq
        %v771 = vshrl.u32 %v770, 7
        %v772 = vsub.s32 0, %v771
        %v773 = vrot.slane %v722, %v772
        %v774 = vlaneseq
        %v775 = vshrl.u32 %v774, 7
        %v776 = vsub.s32 0, %v775
        %v777 = vrot.slane %v730, %v776
        %v778 = vlaneseq
        %v779 = vshrl.u32 %v778, 7
        %v780 = vsub.s32 0, %v779
        %v781 = vrot.slane %v732, %v780
        %v782 = vlaneseq
        %v783 = vshrl.u32 %v782, 7
        %v784 = vsub.s32 0, %v783
        %v785 = vrot.slane %v715, %v784
        %v786 = vlaneseq
        %v787 = vshrl.u32 %v786, 7
        %v788 = vsub.s32 0, %v787
        %v789 = vrot.slane %v729, %v788
        %v790 = vlaneseq
        %v791 = vshrl.u32 %v790, 7
        %v792 = vsub.s32 0, %v791
        %v793 = vrot.slane %v731, %v792
        %v794 = vlaneseq
        %v795 = vshrl.u32 %v794, 7
        %v796 = vsub.s32 0, %v795
        %v797 = vrot.slane %v733, %v796
        %v814 = vadd.f32 %v474, %v737
        %v815 = vadd.f32 %v479, %v737
        %v816 = vadd.f32 %v484, %v741
        %v817 = vadd.f32 %v489, %v741
        %v818 = vadd.f32 %v494, %v745
        %v819 = vadd.f32 %v499, %v745
        %v820 = vadd.f32 %v504, %v749
        %v821 = vadd.f32 %v509, %v749
        %v822 = vadd.f32 %v514, %v753
        %v823 = vadd.f32 %v519, %v753
        %v824 = vadd.f32 %v524, %v757
        %v825 = vadd.f32 %v529, %v757
        %v826 = vadd.f32 %v534, %v761
        %v827 = vadd.f32 %v539, %v761
        %v828 = vadd.f32 %v544, %v765
        %v829 = vadd.f32 %v549, %v765
        %v830 = vadd.f32 %v554, %v769
        %v831 = vadd.f32 %v559, %v769
        %v832 = vadd.f32 %v564, %v773
        %v833 = vadd.f32 %v569, %v773
        %v834 = vadd.f32 %v574, %v777
        %v835 = vadd.f32 %v579, %v777
        %v836 = vadd.f32 %v584, %v781
        %v837 = vadd.f32 %v589, %v781
        %v838 = vadd.f32 %v594, %v785
        %v839 = vadd.f32 %v599, %v785
        %v840 = vadd.f32 %v604, %v789
        %v841 = vadd.f32 %v609, %v789
        %v842 = vadd.f32 %v614, %v793
        %v843 = vadd.f32 %v619, %v793
        %v844 = vadd.f32 %v624, %v797
        %v845 = vadd.f32 %v629, %v797
        %v846 = vtanh.pop %v814
        %v847 = vtanh.pop %v815
        %v848 = vtanh.pop %v816
        %v849 = vtanh.pop %v817
        %v850 = vtanh.pop %v818
        %v851 = vtanh.pop %v819
        %v852 = vtanh.pop %v820
        %v853 = vtanh.pop %v821
        %v854 = vtanh.pop %v822
        %v855 = vtanh.pop %v823
        %v856 = vtanh.pop %v824
        %v857 = vtanh.pop %v825
        %v858 = vtanh.pop %v826
        %v859 = vtanh.pop %v827
        %v860 = vtanh.pop %v828
        %v861 = vtanh.pop %v829
        %v862 = vtanh.pop %v830
        %v863 = vtanh.pop %v831
        %v864 = vtanh.pop %v832
        %v865 = vtanh.pop %v833
        %v866 = vtanh.pop %v834
        %v867 = vtanh.pop %v835
        %v868 = vtanh.pop %v836
        %v869 = vtanh.pop %v837
        %v870 = vtanh.pop %v838
        %v871 = vtanh.pop %v839
        %v872 = vtanh.pop %v840
        %v873 = vtanh.pop %v841
        %v874 = vtanh.pop %v842
        %v875 = vtanh.pop %v843
        %v876 = vtanh.pop %v844
        %v877 = vtanh.pop %v845
        %v878 = vld [vmem:[%s3] sm:$0x1]
        %v880 = vlaneseq
        %v881 = vshrl.u32 %v880, 7
        %v882 = vsub.s32 0, %v881
        %v883 = vrot.slane %v878, %v882
        %v885 = vmul.f32 %v846, %v883
        %v886 = vmul.f32 %v847, %v883
        %v887 = vmul.f32 %v848, %v883
        %v888 = vmul.f32 %v849, %v883
        %v889 = vmul.f32 %v850, %v883
        %v890 = vmul.f32 %v851, %v883
        %v891 = vmul.f32 %v852, %v883
        %v892 = vmul.f32 %v853, %v883
        %v893 = vmul.f32 %v854, %v883
        %v894 = vmul.f32 %v855, %v883
        %v895 = vmul.f32 %v856, %v883
        %v896 = vmul.f32 %v857, %v883
        %v897 = vmul.f32 %v858, %v883
        %v898 = vmul.f32 %v859, %v883
        %v899 = vmul.f32 %v860, %v883
        %v900 = vmul.f32 %v861, %v883
        %v901 = vmul.f32 %v862, %v883
        %v902 = vmul.f32 %v863, %v883
        %v903 = vmul.f32 %v864, %v883
        %v904 = vmul.f32 %v865, %v883
        %v905 = vmul.f32 %v866, %v883
        %v906 = vmul.f32 %v867, %v883
        %v907 = vmul.f32 %v868, %v883
        %v908 = vmul.f32 %v869, %v883
        %v909 = vmul.f32 %v870, %v883
        %v910 = vmul.f32 %v871, %v883
        %v911 = vmul.f32 %v872, %v883
        %v912 = vmul.f32 %v873, %v883
        %v913 = vmul.f32 %v874, %v883
        %v914 = vmul.f32 %v875, %v883
        %v915 = vmul.f32 %v876, %v883
        %v916 = vmul.f32 %v877, %v883
        %v917 = vsel %vm310, %v885, 0.0
        %918 = vadd.xlane.f32.xlu0 %v917
        %v919 = vpop.xlane.xlu0 %918
        %v920 = vsel %vm310, %v886, 0.0
        %921 = vadd.xlane.f32.xlu0 %v920
        %v922 = vpop.xlane.xlu0 %921
        %v923 = vsel %vm310, %v887, 0.0
        %924 = vadd.xlane.f32.xlu0 %v923
        %v925 = vpop.xlane.xlu0 %924
        %v926 = vsel %vm310, %v888, 0.0
        %927 = vadd.xlane.f32.xlu0 %v926
        %v928 = vpop.xlane.xlu0 %927
        %v929 = vsel %vm310, %v889, 0.0
        %930 = vadd.xlane.f32.xlu0 %v929
        %v931 = vpop.xlane.xlu0 %930
        %v932 = vsel %vm310, %v890, 0.0
        %933 = vadd.xlane.f32.xlu0 %v932
        %v934 = vpop.xlane.xlu0 %933
        %v935 = vsel %vm310, %v891, 0.0
        %936 = vadd.xlane.f32.xlu0 %v935
        %v937 = vpop.xlane.xlu0 %936
        %v938 = vsel %vm310, %v892, 0.0
        %939 = vadd.xlane.f32.xlu0 %v938
        %v940 = vpop.xlane.xlu0 %939
        %v941 = vsel %vm310, %v893, 0.0
        %942 = vadd.xlane.f32.xlu0 %v941
        %v943 = vpop.xlane.xlu0 %942
        %v944 = vsel %vm310, %v894, 0.0
        %945 = vadd.xlane.f32.xlu0 %v944
        %v946 = vpop.xlane.xlu0 %945
        %v947 = vsel %vm310, %v895, 0.0
        %948 = vadd.xlane.f32.xlu0 %v947
        %v949 = vpop.xlane.xlu0 %948
        %v950 = vsel %vm310, %v896, 0.0
        %951 = vadd.xlane.f32.xlu0 %v950
        %v952 = vpop.xlane.xlu0 %951
        %v953 = vsel %vm310, %v897, 0.0
        %954 = vadd.xlane.f32.xlu0 %v953
        %v955 = vpop.xlane.xlu0 %954
        %v956 = vsel %vm310, %v898, 0.0
        %957 = vadd.xlane.f32.xlu0 %v956
        %v958 = vpop.xlane.xlu0 %957
        %v959 = vsel %vm310, %v899, 0.0
        %960 = vadd.xlane.f32.xlu0 %v959
        %v961 = vpop.xlane.xlu0 %960
        %v962 = vsel %vm310, %v900, 0.0
        %963 = vadd.xlane.f32.xlu0 %v962
        %v964 = vpop.xlane.xlu0 %963
        %v965 = vsel %vm310, %v901, 0.0
        %966 = vadd.xlane.f32.xlu0 %v965
        %v967 = vpop.xlane.xlu0 %966
        %v968 = vsel %vm310, %v902, 0.0
        %969 = vadd.xlane.f32.xlu0 %v968
        %v970 = vpop.xlane.xlu0 %969
        %v971 = vsel %vm310, %v903, 0.0
        %972 = vadd.xlane.f32.xlu0 %v971
        %v973 = vpop.xlane.xlu0 %972
        %v974 = vsel %vm310, %v904, 0.0
        %975 = vadd.xlane.f32.xlu0 %v974
        %v976 = vpop.xlane.xlu0 %975
        %v977 = vsel %vm310, %v905, 0.0
        %978 = vadd.xlane.f32.xlu0 %v977
        %v979 = vpop.xlane.xlu0 %978
        %v980 = vsel %vm310, %v906, 0.0
        %981 = vadd.xlane.f32.xlu0 %v980
        %v982 = vpop.xlane.xlu0 %981
        %v983 = vsel %vm310, %v907, 0.0
        %984 = vadd.xlane.f32.xlu0 %v983
        %v985 = vpop.xlane.xlu0 %984
        %v986 = vsel %vm310, %v908, 0.0
        %987 = vadd.xlane.f32.xlu0 %v986
        %v988 = vpop.xlane.xlu0 %987
        %v989 = vsel %vm310, %v909, 0.0
        %990 = vadd.xlane.f32.xlu0 %v989
        %v991 = vpop.xlane.xlu0 %990
        %v992 = vsel %vm310, %v910, 0.0
        %993 = vadd.xlane.f32.xlu0 %v992
        %v994 = vpop.xlane.xlu0 %993
        %v995 = vsel %vm310, %v911, 0.0
        %996 = vadd.xlane.f32.xlu0 %v995
        %v997 = vpop.xlane.xlu0 %996
        %v998 = vsel %vm310, %v912, 0.0
        %999 = vadd.xlane.f32.xlu0 %v998
        %v1000 = vpop.xlane.xlu0 %999
        %v1001 = vsel %vm310, %v913, 0.0
        %1002 = vadd.xlane.f32.xlu0 %v1001
        %v1003 = vpop.xlane.xlu0 %1002
        %v1004 = vsel %vm310, %v914, 0.0
        %1005 = vadd.xlane.f32.xlu0 %v1004
        %v1006 = vpop.xlane.xlu0 %1005
        %v1007 = vsel %vm310, %v915, 0.0
        %1008 = vadd.xlane.f32.xlu0 %v1007
        %v1009 = vpop.xlane.xlu0 %1008
        %v1010 = vsel %vm310, %v916, 0.0
        %1011 = vadd.xlane.f32.xlu0 %v1010
        %v1012 = vpop.xlane.xlu0 %1011
        %v1045 = vlaneseq
        %v1046 = vand.u32 %v1045, 127
        %v1047 = vlaneseq
        %v1048 = vshrl.u32 %v1047, 7
        %v1049 = vsub.s32 %v1046, %v1048
        %v1050 = vrot.slane %v919, %v1049
        %v1051 = vadd.s32 %v1046, 4294967288
        %v1052 = vlaneseq
        %v1053 = vshrl.u32 %v1052, 7
        %v1054 = vsub.s32 %v1051, %v1053
        %v1055 = vrot.slane %v922, %v1054
        %vm1056 = vcmask 130112
        %v1057 = vsel %vm1056, %v1055, %v1050
        %v1058 = vlaneseq
        %v1059 = vshrl.u32 %v1058, 7
        %v1060 = vsub.s32 %v1046, %v1059
        %v1061 = vrot.slane %v925, %v1060
        %v1062 = vlaneseq
        %v1063 = vshrl.u32 %v1062, 7
        %v1064 = vsub.s32 %v1051, %v1063
        %v1065 = vrot.slane %v928, %v1064
        %v1066 = vsel %vm1056, %v1065, %v1061
        %v1067 = vlaneseq
        %v1068 = vshrl.u32 %v1067, 7
        %v1069 = vsub.s32 %v1046, %v1068
        %v1070 = vrot.slane %v931, %v1069
        %v1071 = vlaneseq
        %v1072 = vshrl.u32 %v1071, 7
        %v1073 = vsub.s32 %v1051, %v1072
        %v1074 = vrot.slane %v934, %v1073
        %v1075 = vsel %vm1056, %v1074, %v1070
        %v1076 = vlaneseq
        %v1077 = vshrl.u32 %v1076, 7
        %v1078 = vsub.s32 %v1046, %v1077
        %v1079 = vrot.slane %v937, %v1078
        %v1080 = vlaneseq
        %v1081 = vshrl.u32 %v1080, 7
        %v1082 = vsub.s32 %v1051, %v1081
        %v1083 = vrot.slane %v940, %v1082
        %v1084 = vsel %vm1056, %v1083, %v1079
        %v1085 = vlaneseq
        %v1086 = vshrl.u32 %v1085, 7
        %v1087 = vsub.s32 %v1046, %v1086
        %v1088 = vrot.slane %v943, %v1087
        %v1089 = vlaneseq
        %v1090 = vshrl.u32 %v1089, 7
        %v1091 = vsub.s32 %v1051, %v1090
        %v1092 = vrot.slane %v946, %v1091
        %v1093 = vsel %vm1056, %v1092, %v1088
        %v1094 = vlaneseq
        %v1095 = vshrl.u32 %v1094, 7
        %v1096 = vsub.s32 %v1046, %v1095
        %v1097 = vrot.slane %v949, %v1096
        %v1098 = vlaneseq
        %v1099 = vshrl.u32 %v1098, 7
        %v1100 = vsub.s32 %v1051, %v1099
        %v1101 = vrot.slane %v952, %v1100
        %v1102 = vsel %vm1056, %v1101, %v1097
        %v1103 = vlaneseq
        %v1104 = vshrl.u32 %v1103, 7
        %v1105 = vsub.s32 %v1046, %v1104
        %v1106 = vrot.slane %v955, %v1105
        %v1107 = vlaneseq
        %v1108 = vshrl.u32 %v1107, 7
        %v1109 = vsub.s32 %v1051, %v1108
        %v1110 = vrot.slane %v958, %v1109
        %v1111 = vsel %vm1056, %v1110, %v1106
        %v1112 = vlaneseq
        %v1113 = vshrl.u32 %v1112, 7
        %v1114 = vsub.s32 %v1046, %v1113
        %v1115 = vrot.slane %v961, %v1114
        %v1116 = vlaneseq
        %v1117 = vshrl.u32 %v1116, 7
        %v1118 = vsub.s32 %v1051, %v1117
        %v1119 = vrot.slane %v964, %v1118
        %v1120 = vsel %vm1056, %v1119, %v1115
        %v1121 = vlaneseq
        %v1122 = vshrl.u32 %v1121, 7
        %v1123 = vsub.s32 %v1046, %v1122
        %v1124 = vrot.slane %v967, %v1123
        %v1125 = vlaneseq
        %v1126 = vshrl.u32 %v1125, 7
        %v1127 = vsub.s32 %v1051, %v1126
        %v1128 = vrot.slane %v970, %v1127
        %v1129 = vsel %vm1056, %v1128, %v1124
        %v1130 = vlaneseq
        %v1131 = vshrl.u32 %v1130, 7
        %v1132 = vsub.s32 %v1046, %v1131
        %v1133 = vrot.slane %v973, %v1132
        %v1134 = vlaneseq
        %v1135 = vshrl.u32 %v1134, 7
        %v1136 = vsub.s32 %v1051, %v1135
        %v1137 = vrot.slane %v976, %v1136
        %v1138 = vsel %vm1056, %v1137, %v1133
        %v1139 = vlaneseq
        %v1140 = vshrl.u32 %v1139, 7
        %v1141 = vsub.s32 %v1046, %v1140
        %v1142 = vrot.slane %v979, %v1141
        %v1143 = vlaneseq
        %v1144 = vshrl.u32 %v1143, 7
        %v1145 = vsub.s32 %v1051, %v1144
        %v1146 = vrot.slane %v982, %v1145
        %v1147 = vsel %vm1056, %v1146, %v1142
        %v1148 = vlaneseq
        %v1149 = vshrl.u32 %v1148, 7
        %v1150 = vsub.s32 %v1046, %v1149
        %v1151 = vrot.slane %v985, %v1150
        %v1152 = vlaneseq
        %v1153 = vshrl.u32 %v1152, 7
        %v1154 = vsub.s32 %v1051, %v1153
        %v1155 = vrot.slane %v988, %v1154
        %v1156 = vsel %vm1056, %v1155, %v1151
        %v1157 = vlaneseq
        %v1158 = vshrl.u32 %v1157, 7
        %v1159 = vsub.s32 %v1046, %v1158
        %v1160 = vrot.slane %v991, %v1159
        %v1161 = vlaneseq
        %v1162 = vshrl.u32 %v1161, 7
        %v1163 = vsub.s32 %v1051, %v1162
        %v1164 = vrot.slane %v994, %v1163
        %v1165 = vsel %vm1056, %v1164, %v1160
        %v1166 = vlaneseq
        %v1167 = vshrl.u32 %v1166, 7
        %v1168 = vsub.s32 %v1046, %v1167
        %v1169 = vrot.slane %v997, %v1168
        %v1170 = vlaneseq
        %v1171 = vshrl.u32 %v1170, 7
        %v1172 = vsub.s32 %v1051, %v1171
        %v1173 = vrot.slane %v1000, %v1172
        %v1174 = vsel %vm1056, %v1173, %v1169
        %v1175 = vlaneseq
        %v1176 = vshrl.u32 %v1175, 7
        %v1177 = vsub.s32 %v1046, %v1176
        %v1178 = vrot.slane %v1003, %v1177
        %v1179 = vlaneseq
        %v1180 = vshrl.u32 %v1179, 7
        %v1181 = vsub.s32 %v1051, %v1180
        %v1182 = vrot.slane %v1006, %v1181
        %v1183 = vsel %vm1056, %v1182, %v1178
        %v1184 = vlaneseq
        %v1185 = vshrl.u32 %v1184, 7
        %v1186 = vsub.s32 %v1046, %v1185
        %v1187 = vrot.slane %v1009, %v1186
        %v1188 = vlaneseq
        %v1189 = vshrl.u32 %v1188, 7
        %v1190 = vsub.s32 %v1051, %v1189
        %v1191 = vrot.slane %v1012, %v1190
        %v1192 = vsel %vm1056, %v1191, %v1187
        %vm1193 = vcmask 1041409
        %v1194 = vsel %vm1193, %v1066, %v1057
        %vm1195 = vcmask 1042434
        %v1196 = vsel %vm1195, %v1075, %v1194
        %vm1197 = vcmask 1043459
        %v1198 = vsel %vm1197, %v1084, %v1196
        %vm1199 = vcmask 1044484
        %v1200 = vsel %vm1199, %v1093, %v1198
        %vm1201 = vcmask 1045509
        %v1202 = vsel %vm1201, %v1102, %v1200
        %vm1203 = vcmask 1046534
        %v1204 = vsel %vm1203, %v1111, %v1202
        %vm1205 = vcmask 1047559
        %v1206 = vsel %vm1205, %v1120, %v1204
        %v1207 = vsel %vm1193, %v1138, %v1129
        %v1208 = vsel %vm1195, %v1147, %v1207
        %v1209 = vsel %vm1197, %v1156, %v1208
        %v1210 = vsel %vm1199, %v1165, %v1209
        %v1211 = vsel %vm1201, %v1174, %v1210
        %v1212 = vsel %vm1203, %v1183, %v1211
        %v1213 = vsel %vm1205, %v1192, %v1212
        %vm1216 = vcmask 130048
        %v1217 = vsel %vm1216, %v1206, -inf
        %1218 = vmax.xlane.f32.xlu0 %v1217
        %v1219 = vpop.xlane.xlu0 %1218
        %v1220 = vsel %vm1216, %v1213, -inf
        %1221 = vmax.xlane.f32.xlu0 %v1220
        %v1222 = vpop.xlane.xlu0 %1221
        %v1225 = vlaneseq
        %v1226 = vshrl.u32 %v1225, 7
        %v1227 = vsub.s32 0, %v1226
        %v1228 = vrot.slane %v1219, %v1227
        %v1229 = vlaneseq
        %v1230 = vshrl.u32 %v1229, 7
        %v1231 = vsub.s32 1, %v1230
        %v1232 = vrot.slane %v1219, %v1231
        %v1233 = vlaneseq
        %v1234 = vshrl.u32 %v1233, 7
        %v1235 = vsub.s32 2, %v1234
        %v1236 = vrot.slane %v1219, %v1235
        %v1237 = vlaneseq
        %v1238 = vshrl.u32 %v1237, 7
        %v1239 = vsub.s32 3, %v1238
        %v1240 = vrot.slane %v1219, %v1239
        %v1241 = vlaneseq
        %v1242 = vshrl.u32 %v1241, 7
        %v1243 = vsub.s32 4, %v1242
        %v1244 = vrot.slane %v1219, %v1243
        %v1245 = vlaneseq
        %v1246 = vshrl.u32 %v1245, 7
        %v1247 = vsub.s32 5, %v1246
        %v1248 = vrot.slane %v1219, %v1247
        %v1249 = vlaneseq
        %v1250 = vshrl.u32 %v1249, 7
        %v1251 = vsub.s32 6, %v1250
        %v1252 = vrot.slane %v1219, %v1251
        %v1253 = vlaneseq
        %v1254 = vshrl.u32 %v1253, 7
        %v1255 = vsub.s32 7, %v1254
        %v1256 = vrot.slane %v1219, %v1255
        %v1257 = vlaneseq
        %v1258 = vshrl.u32 %v1257, 7
        %v1259 = vsub.s32 0, %v1258
        %v1260 = vrot.slane %v1222, %v1259
        %v1261 = vlaneseq
        %v1262 = vshrl.u32 %v1261, 7
        %v1263 = vsub.s32 1, %v1262
        %v1264 = vrot.slane %v1222, %v1263
        %v1265 = vlaneseq
        %v1266 = vshrl.u32 %v1265, 7
        %v1267 = vsub.s32 2, %v1266
        %v1268 = vrot.slane %v1222, %v1267
        %v1269 = vlaneseq
        %v1270 = vshrl.u32 %v1269, 7
        %v1271 = vsub.s32 3, %v1270
        %v1272 = vrot.slane %v1222, %v1271
        %v1273 = vlaneseq
        %v1274 = vshrl.u32 %v1273, 7
        %v1275 = vsub.s32 4, %v1274
        %v1276 = vrot.slane %v1222, %v1275
        %v1277 = vlaneseq
        %v1278 = vshrl.u32 %v1277, 7
        %v1279 = vsub.s32 5, %v1278
        %v1280 = vrot.slane %v1222, %v1279
        %v1281 = vlaneseq
        %v1282 = vshrl.u32 %v1281, 7
        %v1283 = vsub.s32 6, %v1282
        %v1284 = vrot.slane %v1222, %v1283
        %v1285 = vlaneseq
        %v1286 = vshrl.u32 %v1285, 7
        %v1287 = vsub.s32 7, %v1286
        %v1288 = vrot.slane %v1222, %v1287
        %v1305 = vsub.f32 %v919, %v1228
        %v1306 = vsub.f32 %v922, %v1228
        %v1307 = vsub.f32 %v925, %v1232
        %v1308 = vsub.f32 %v928, %v1232
        %v1309 = vsub.f32 %v931, %v1236
        %v1310 = vsub.f32 %v934, %v1236
        %v1311 = vsub.f32 %v937, %v1240
        %v1312 = vsub.f32 %v940, %v1240
        %v1313 = vsub.f32 %v943, %v1244
        %v1314 = vsub.f32 %v946, %v1244
        %v1315 = vsub.f32 %v949, %v1248
        %v1316 = vsub.f32 %v952, %v1248
        %v1317 = vsub.f32 %v955, %v1252
        %v1318 = vsub.f32 %v958, %v1252
        %v1319 = vsub.f32 %v961, %v1256
        %v1320 = vsub.f32 %v964, %v1256
        %v1321 = vsub.f32 %v967, %v1260
        %v1322 = vsub.f32 %v970, %v1260
        %v1323 = vsub.f32 %v973, %v1264
        %v1324 = vsub.f32 %v976, %v1264
        %v1325 = vsub.f32 %v979, %v1268
        %v1326 = vsub.f32 %v982, %v1268
        %v1327 = vsub.f32 %v985, %v1272
        %v1328 = vsub.f32 %v988, %v1272
        %v1329 = vsub.f32 %v991, %v1276
        %v1330 = vsub.f32 %v994, %v1276
        %v1331 = vsub.f32 %v997, %v1280
        %v1332 = vsub.f32 %v1000, %v1280
        %v1333 = vsub.f32 %v1003, %v1284
        %v1334 = vsub.f32 %v1006, %v1284
        %v1335 = vsub.f32 %v1009, %v1288
        %v1336 = vsub.f32 %v1012, %v1288
        %v1337 = vmul.f32 %v1305, 1.442695
        %v1338 = vpow.pop %v1337
        %v1339 = vmul.f32 %v1306, 1.442695
        %v1340 = vpow.pop %v1339
        %v1341 = vmul.f32 %v1307, 1.442695
        %v1342 = vpow.pop %v1341
        %v1343 = vmul.f32 %v1308, 1.442695
        %v1344 = vpow.pop %v1343
        %v1345 = vmul.f32 %v1309, 1.442695
        %v1346 = vpow.pop %v1345
        %v1347 = vmul.f32 %v1310, 1.442695
        %v1348 = vpow.pop %v1347
        %v1349 = vmul.f32 %v1311, 1.442695
        %v1350 = vpow.pop %v1349
        %v1351 = vmul.f32 %v1312, 1.442695
        %v1352 = vpow.pop %v1351
        %v1353 = vmul.f32 %v1313, 1.442695
        %v1354 = vpow.pop %v1353
        %v1355 = vmul.f32 %v1314, 1.442695
        %v1356 = vpow.pop %v1355
        %v1357 = vmul.f32 %v1315, 1.442695
        %v1358 = vpow.pop %v1357
        %v1359 = vmul.f32 %v1316, 1.442695
        %v1360 = vpow.pop %v1359
        %v1361 = vmul.f32 %v1317, 1.442695
        %v1362 = vpow.pop %v1361
        %v1363 = vmul.f32 %v1318, 1.442695
        %v1364 = vpow.pop %v1363
        %v1365 = vmul.f32 %v1319, 1.442695
        %v1366 = vpow.pop %v1365
        %v1367 = vmul.f32 %v1320, 1.442695
        %v1368 = vpow.pop %v1367
        %v1369 = vmul.f32 %v1321, 1.442695
        %v1370 = vpow.pop %v1369
        %v1371 = vmul.f32 %v1322, 1.442695
        %v1372 = vpow.pop %v1371
        %v1373 = vmul.f32 %v1323, 1.442695
        %v1374 = vpow.pop %v1373
        %v1375 = vmul.f32 %v1324, 1.442695
        %v1376 = vpow.pop %v1375
        %v1377 = vmul.f32 %v1325, 1.442695
        %v1378 = vpow.pop %v1377
        %v1379 = vmul.f32 %v1326, 1.442695
        %v1380 = vpow.pop %v1379
        %v1381 = vmul.f32 %v1327, 1.442695
        %v1382 = vpow.pop %v1381
        %v1383 = vmul.f32 %v1328, 1.442695
        %v1384 = vpow.pop %v1383
        %v1385 = vmul.f32 %v1329, 1.442695
        %v1386 = vpow.pop %v1385
        %v1387 = vmul.f32 %v1330, 1.442695
        %v1388 = vpow.pop %v1387
        %v1389 = vmul.f32 %v1331, 1.442695
        %v1390 = vpow.pop %v1389
        %v1391 = vmul.f32 %v1332, 1.442695
        %v1392 = vpow.pop %v1391
        %v1393 = vmul.f32 %v1333, 1.442695
        %v1394 = vpow.pop %v1393
        %v1395 = vmul.f32 %v1334, 1.442695
        %v1396 = vpow.pop %v1395
        %v1397 = vmul.f32 %v1335, 1.442695
        %v1398 = vpow.pop %v1397
        %v1399 = vmul.f32 %v1336, 1.442695
        %v1400 = vpow.pop %v1399
        %1433 = vset.pattern.permute.xlu0 0
        %1434 = vperm.xlu0 %1433, %v1338
        %v1435 = vpop.permute.xlu0 %1434
        %1436 = vset.pattern.permute.xlu0 0
        %1437 = vperm.xlu0 %1436, %v1340
        %v1438 = vpop.permute.xlu0 %1437
        %1439 = vset.pattern.permute.xlu0 0
        %1440 = vperm.xlu0 %1439, %v1342
        %v1441 = vpop.permute.xlu0 %1440
        %1442 = vset.pattern.permute.xlu0 0
        %1443 = vperm.xlu0 %1442, %v1344
        %v1444 = vpop.permute.xlu0 %1443
        %1445 = vset.pattern.permute.xlu0 0
        %1446 = vperm.xlu0 %1445, %v1346
        %v1447 = vpop.permute.xlu0 %1446
        %1448 = vset.pattern.permute.xlu0 0
        %1449 = vperm.xlu0 %1448, %v1348
        %v1450 = vpop.permute.xlu0 %1449
        %1451 = vset.pattern.permute.xlu0 0
        %1452 = vperm.xlu0 %1451, %v1350
        %v1453 = vpop.permute.xlu0 %1452
        %1454 = vset.pattern.permute.xlu0 0
        %1455 = vperm.xlu0 %1454, %v1352
        %v1456 = vpop.permute.xlu0 %1455
        %1457 = vset.pattern.permute.xlu0 0
        %1458 = vperm.xlu0 %1457, %v1354
        %v1459 = vpop.permute.xlu0 %1458
        %1460 = vset.pattern.permute.xlu0 0
        %1461 = vperm.xlu0 %1460, %v1356
        %v1462 = vpop.permute.xlu0 %1461
        %1463 = vset.pattern.permute.xlu0 0
        %1464 = vperm.xlu0 %1463, %v1358
        %v1465 = vpop.permute.xlu0 %1464
        %1466 = vset.pattern.permute.xlu0 0
        %1467 = vperm.xlu0 %1466, %v1360
        %v1468 = vpop.permute.xlu0 %1467
        %1469 = vset.pattern.permute.xlu0 0
        %1470 = vperm.xlu0 %1469, %v1362
        %v1471 = vpop.permute.xlu0 %1470
        %1472 = vset.pattern.permute.xlu0 0
        %1473 = vperm.xlu0 %1472, %v1364
        %v1474 = vpop.permute.xlu0 %1473
        %1475 = vset.pattern.permute.xlu0 0
        %1476 = vperm.xlu0 %1475, %v1366
        %v1477 = vpop.permute.xlu0 %1476
        %1478 = vset.pattern.permute.xlu0 0
        %1479 = vperm.xlu0 %1478, %v1368
        %v1480 = vpop.permute.xlu0 %1479
        %1481 = vset.pattern.permute.xlu0 0
        %1482 = vperm.xlu0 %1481, %v1370
        %v1483 = vpop.permute.xlu0 %1482
        %1484 = vset.pattern.permute.xlu0 0
        %1485 = vperm.xlu0 %1484, %v1372
        %v1486 = vpop.permute.xlu0 %1485
        %1487 = vset.pattern.permute.xlu0 0
        %1488 = vperm.xlu0 %1487, %v1374
        %v1489 = vpop.permute.xlu0 %1488
        %1490 = vset.pattern.permute.xlu0 0
        %1491 = vperm.xlu0 %1490, %v1376
        %v1492 = vpop.permute.xlu0 %1491
        %1493 = vset.pattern.permute.xlu0 0
        %1494 = vperm.xlu0 %1493, %v1378
        %v1495 = vpop.permute.xlu0 %1494
        %1496 = vset.pattern.permute.xlu0 0
        %1497 = vperm.xlu0 %1496, %v1380
        %v1498 = vpop.permute.xlu0 %1497
        %1499 = vset.pattern.permute.xlu0 0
        %1500 = vperm.xlu0 %1499, %v1382
        %v1501 = vpop.permute.xlu0 %1500
        %1502 = vset.pattern.permute.xlu0 0
        %1503 = vperm.xlu0 %1502, %v1384
        %v1504 = vpop.permute.xlu0 %1503
        %1505 = vset.pattern.permute.xlu0 0
        %1506 = vperm.xlu0 %1505, %v1386
        %v1507 = vpop.permute.xlu0 %1506
        %1508 = vset.pattern.permute.xlu0 0
        %1509 = vperm.xlu0 %1508, %v1388
        %v1510 = vpop.permute.xlu0 %1509
        %1511 = vset.pattern.permute.xlu0 0
        %1512 = vperm.xlu0 %1511, %v1390
        %v1513 = vpop.permute.xlu0 %1512
        %1514 = vset.pattern.permute.xlu0 0
        %1515 = vperm.xlu0 %1514, %v1392
        %v1516 = vpop.permute.xlu0 %1515
        %1517 = vset.pattern.permute.xlu0 0
        %1518 = vperm.xlu0 %1517, %v1394
        %v1519 = vpop.permute.xlu0 %1518
        %1520 = vset.pattern.permute.xlu0 0
        %1521 = vperm.xlu0 %1520, %v1396
        %v1522 = vpop.permute.xlu0 %1521
        %1523 = vset.pattern.permute.xlu0 0
        %1524 = vperm.xlu0 %1523, %v1398
        %v1525 = vpop.permute.xlu0 %1524
        %1526 = vset.pattern.permute.xlu0 0
        %1527 = vperm.xlu0 %1526, %v1400
        %v1528 = vpop.permute.xlu0 %1527
        %v1529 = vlaneseq
        %v1530 = vshrl.u32 %v1529, 7
        %v1531 = vsub.s32 %v1046, %v1530
        %v1532 = vrot.slane %v1435, %v1531
        %v1533 = vlaneseq
        %v1534 = vshrl.u32 %v1533, 7
        %v1535 = vsub.s32 %v1051, %v1534
        %v1536 = vrot.slane %v1438, %v1535
        %v1537 = vsel %vm1056, %v1536, %v1532
        %v1538 = vlaneseq
        %v1539 = vshrl.u32 %v1538, 7
        %v1540 = vsub.s32 %v1046, %v1539
        %v1541 = vrot.slane %v1441, %v1540
        %v1542 = vlaneseq
        %v1543 = vshrl.u32 %v1542, 7
        %v1544 = vsub.s32 %v1051, %v1543
        %v1545 = vrot.slane %v1444, %v1544
        %v1546 = vsel %vm1056, %v1545, %v1541
        %v1547 = vlaneseq
        %v1548 = vshrl.u32 %v1547, 7
        %v1549 = vsub.s32 %v1046, %v1548
        %v1550 = vrot.slane %v1447, %v1549
        %v1551 = vlaneseq
        %v1552 = vshrl.u32 %v1551, 7
        %v1553 = vsub.s32 %v1051, %v1552
        %v1554 = vrot.slane %v1450, %v1553
        %v1555 = vsel %vm1056, %v1554, %v1550
        %v1556 = vlaneseq
        %v1557 = vshrl.u32 %v1556, 7
        %v1558 = vsub.s32 %v1046, %v1557
        %v1559 = vrot.slane %v1453, %v1558
        %v1560 = vlaneseq
        %v1561 = vshrl.u32 %v1560, 7
        %v1562 = vsub.s32 %v1051, %v1561
        %v1563 = vrot.slane %v1456, %v1562
        %v1564 = vsel %vm1056, %v1563, %v1559
        %v1565 = vlaneseq
        %v1566 = vshrl.u32 %v1565, 7
        %v1567 = vsub.s32 %v1046, %v1566
        %v1568 = vrot.slane %v1459, %v1567
        %v1569 = vlaneseq
        %v1570 = vshrl.u32 %v1569, 7
        %v1571 = vsub.s32 %v1051, %v1570
        %v1572 = vrot.slane %v1462, %v1571
        %v1573 = vsel %vm1056, %v1572, %v1568
        %v1574 = vlaneseq
        %v1575 = vshrl.u32 %v1574, 7
        %v1576 = vsub.s32 %v1046, %v1575
        %v1577 = vrot.slane %v1465, %v1576
        %v1578 = vlaneseq
        %v1579 = vshrl.u32 %v1578, 7
        %v1580 = vsub.s32 %v1051, %v1579
        %v1581 = vrot.slane %v1468, %v1580
        %v1582 = vsel %vm1056, %v1581, %v1577
        %v1583 = vlaneseq
        %v1584 = vshrl.u32 %v1583, 7
        %v1585 = vsub.s32 %v1046, %v1584
        %v1586 = vrot.slane %v1471, %v1585
        %v1587 = vlaneseq
        %v1588 = vshrl.u32 %v1587, 7
        %v1589 = vsub.s32 %v1051, %v1588
        %v1590 = vrot.slane %v1474, %v1589
        %v1591 = vsel %vm1056, %v1590, %v1586
        %v1592 = vlaneseq
        %v1593 = vshrl.u32 %v1592, 7
        %v1594 = vsub.s32 %v1046, %v1593
        %v1595 = vrot.slane %v1477, %v1594
        %v1596 = vlaneseq
        %v1597 = vshrl.u32 %v1596, 7
        %v1598 = vsub.s32 %v1051, %v1597
        %v1599 = vrot.slane %v1480, %v1598
        %v1600 = vsel %vm1056, %v1599, %v1595
        %v1601 = vlaneseq
        %v1602 = vshrl.u32 %v1601, 7
        %v1603 = vsub.s32 %v1046, %v1602
        %v1604 = vrot.slane %v1483, %v1603
        %v1605 = vlaneseq
        %v1606 = vshrl.u32 %v1605, 7
        %v1607 = vsub.s32 %v1051, %v1606
        %v1608 = vrot.slane %v1486, %v1607
        %v1609 = vsel %vm1056, %v1608, %v1604
        %v1610 = vlaneseq
        %v1611 = vshrl.u32 %v1610, 7
        %v1612 = vsub.s32 %v1046, %v1611
        %v1613 = vrot.slane %v1489, %v1612
        %v1614 = vlaneseq
        %v1615 = vshrl.u32 %v1614, 7
        %v1616 = vsub.s32 %v1051, %v1615
        %v1617 = vrot.slane %v1492, %v1616
        %v1618 = vsel %vm1056, %v1617, %v1613
        %v1619 = vlaneseq
        %v1620 = vshrl.u32 %v1619, 7
        %v1621 = vsub.s32 %v1046, %v1620
        %v1622 = vrot.slane %v1495, %v1621
        %v1623 = vlaneseq
        %v1624 = vshrl.u32 %v1623, 7
        %v1625 = vsub.s32 %v1051, %v1624
        %v1626 = vrot.slane %v1498, %v1625
        %v1627 = vsel %vm1056, %v1626, %v1622
        %v1628 = vlaneseq
        %v1629 = vshrl.u32 %v1628, 7
        %v1630 = vsub.s32 %v1046, %v1629
        %v1631 = vrot.slane %v1501, %v1630
        %v1632 = vlaneseq
        %v1633 = vshrl.u32 %v1632, 7
        %v1634 = vsub.s32 %v1051, %v1633
        %v1635 = vrot.slane %v1504, %v1634
        %v1636 = vsel %vm1056, %v1635, %v1631
        %v1637 = vlaneseq
        %v1638 = vshrl.u32 %v1637, 7
        %v1639 = vsub.s32 %v1046, %v1638
        %v1640 = vrot.slane %v1507, %v1639
        %v1641 = vlaneseq
        %v1642 = vshrl.u32 %v1641, 7
        %v1643 = vsub.s32 %v1051, %v1642
        %v1644 = vrot.slane %v1510, %v1643
        %v1645 = vsel %vm1056, %v1644, %v1640
        %v1646 = vlaneseq
        %v1647 = vshrl.u32 %v1646, 7
        %v1648 = vsub.s32 %v1046, %v1647
        %v1649 = vrot.slane %v1513, %v1648
        %v1650 = vlaneseq
        %v1651 = vshrl.u32 %v1650, 7
        %v1652 = vsub.s32 %v1051, %v1651
        %v1653 = vrot.slane %v1516, %v1652
        %v1654 = vsel %vm1056, %v1653, %v1649
        %v1655 = vlaneseq
        %v1656 = vshrl.u32 %v1655, 7
        %v1657 = vsub.s32 %v1046, %v1656
        %v1658 = vrot.slane %v1519, %v1657
        %v1659 = vlaneseq
        %v1660 = vshrl.u32 %v1659, 7
        %v1661 = vsub.s32 %v1051, %v1660
        %v1662 = vrot.slane %v1522, %v1661
        %v1663 = vsel %vm1056, %v1662, %v1658
        %v1664 = vlaneseq
        %v1665 = vshrl.u32 %v1664, 7
        %v1666 = vsub.s32 %v1046, %v1665
        %v1667 = vrot.slane %v1525, %v1666
        %v1668 = vlaneseq
        %v1669 = vshrl.u32 %v1668, 7
        %v1670 = vsub.s32 %v1051, %v1669
        %v1671 = vrot.slane %v1528, %v1670
        %v1672 = vsel %vm1056, %v1671, %v1667
        %v1673 = vsel %vm1193, %v1546, %v1537
        %v1674 = vsel %vm1195, %v1555, %v1673
        %v1675 = vsel %vm1197, %v1564, %v1674
        %v1676 = vsel %vm1199, %v1573, %v1675
        %v1677 = vsel %vm1201, %v1582, %v1676
        %v1678 = vsel %vm1203, %v1591, %v1677
        %v1679 = vsel %vm1205, %v1600, %v1678
        %v1680 = vsel %vm1193, %v1618, %v1609
        %v1681 = vsel %vm1195, %v1627, %v1680
        %v1682 = vsel %vm1197, %v1636, %v1681
        %v1683 = vsel %vm1199, %v1645, %v1682
        %v1684 = vsel %vm1201, %v1654, %v1683
        %v1685 = vsel %vm1203, %v1663, %v1684
        %v1686 = vsel %vm1205, %v1672, %v1685
        %v1689 = vsel %vm1216, %v1679, 0.0
        %1690 = vadd.xlane.f32.xlu0 %v1689
        %v1691 = vpop.xlane.xlu0 %1690
        %v1692 = vsel %vm1216, %v1686, 0.0
        %1693 = vadd.xlane.f32.xlu0 %v1692
        %v1694 = vpop.xlane.xlu0 %1693
        %v1695 = vrcp.pop %v1691
        %v1696 = vrcp.pop %v1694
        %v1699 = vlaneseq
        %v1700 = vshrl.u32 %v1699, 7
        %v1701 = vsub.s32 0, %v1700
        %v1702 = vrot.slane %v1695, %v1701
        %v1703 = vlaneseq
        %v1704 = vshrl.u32 %v1703, 7
        %v1705 = vsub.s32 1, %v1704
        %v1706 = vrot.slane %v1695, %v1705
        %v1707 = vlaneseq
        %v1708 = vshrl.u32 %v1707, 7
        %v1709 = vsub.s32 2, %v1708
        %v1710 = vrot.slane %v1695, %v1709
        %v1711 = vlaneseq
        %v1712 = vshrl.u32 %v1711, 7
        %v1713 = vsub.s32 3, %v1712
        %v1714 = vrot.slane %v1695, %v1713
        %v1715 = vlaneseq
        %v1716 = vshrl.u32 %v1715, 7
        %v1717 = vsub.s32 4, %v1716
        %v1718 = vrot.slane %v1695, %v1717
        %v1719 = vlaneseq
        %v1720 = vshrl.u32 %v1719, 7
        %v1721 = vsub.s32 5, %v1720
        %v1722 = vrot.slane %v1695, %v1721
        %v1723 = vlaneseq
        %v1724 = vshrl.u32 %v1723, 7
        %v1725 = vsub.s32 6, %v1724
        %v1726 = vrot.slane %v1695, %v1725
        %v1727 = vlaneseq
        %v1728 = vshrl.u32 %v1727, 7
        %v1729 = vsub.s32 7, %v1728
        %v1730 = vrot.slane %v1695, %v1729
        %v1731 = vlaneseq
        %v1732 = vshrl.u32 %v1731, 7
        %v1733 = vsub.s32 0, %v1732
        %v1734 = vrot.slane %v1696, %v1733
        %v1735 = vlaneseq
        %v1736 = vshrl.u32 %v1735, 7
        %v1737 = vsub.s32 1, %v1736
        %v1738 = vrot.slane %v1696, %v1737
        %v1739 = vlaneseq
        %v1740 = vshrl.u32 %v1739, 7
        %v1741 = vsub.s32 2, %v1740
        %v1742 = vrot.slane %v1696, %v1741
        %v1743 = vlaneseq
        %v1744 = vshrl.u32 %v1743, 7
        %v1745 = vsub.s32 3, %v1744
        %v1746 = vrot.slane %v1696, %v1745
        %v1747 = vlaneseq
        %v1748 = vshrl.u32 %v1747, 7
        %v1749 = vsub.s32 4, %v1748
        %v1750 = vrot.slane %v1696, %v1749
        %v1751 = vlaneseq
        %v1752 = vshrl.u32 %v1751, 7
        %v1753 = vsub.s32 5, %v1752
        %v1754 = vrot.slane %v1696, %v1753
        %v1755 = vlaneseq
        %v1756 = vshrl.u32 %v1755, 7
        %v1757 = vsub.s32 6, %v1756
        %v1758 = vrot.slane %v1696, %v1757
        %v1759 = vlaneseq
        %v1760 = vshrl.u32 %v1759, 7
        %v1761 = vsub.s32 7, %v1760
        %v1762 = vrot.slane %v1696, %v1761
        %v1779 = vmul.f32 %v1338, %v1702
        %v1780 = vmul.f32 %v1340, %v1702
        %v1781 = vmul.f32 %v1342, %v1706
        %v1782 = vmul.f32 %v1344, %v1706
        %v1783 = vmul.f32 %v1346, %v1710
        %v1784 = vmul.f32 %v1348, %v1710
        %v1785 = vmul.f32 %v1350, %v1714
        %v1786 = vmul.f32 %v1352, %v1714
        %v1787 = vmul.f32 %v1354, %v1718
        %v1788 = vmul.f32 %v1356, %v1718
        %v1789 = vmul.f32 %v1358, %v1722
        %v1790 = vmul.f32 %v1360, %v1722
        %v1791 = vmul.f32 %v1362, %v1726
        %v1792 = vmul.f32 %v1364, %v1726
        %v1793 = vmul.f32 %v1366, %v1730
        %v1794 = vmul.f32 %v1368, %v1730
        %v1795 = vmul.f32 %v1370, %v1734
        %v1796 = vmul.f32 %v1372, %v1734
        %v1797 = vmul.f32 %v1374, %v1738
        %v1798 = vmul.f32 %v1376, %v1738
        %v1799 = vmul.f32 %v1378, %v1742
        %v1800 = vmul.f32 %v1380, %v1742
        %v1801 = vmul.f32 %v1382, %v1746
        %v1802 = vmul.f32 %v1384, %v1746
        %v1803 = vmul.f32 %v1386, %v1750
        %v1804 = vmul.f32 %v1388, %v1750
        %v1805 = vmul.f32 %v1390, %v1754
        %v1806 = vmul.f32 %v1392, %v1754
        %v1807 = vmul.f32 %v1394, %v1758
        %v1808 = vmul.f32 %v1396, %v1758
        %v1809 = vmul.f32 %v1398, %v1762
        %v1810 = vmul.f32 %v1400, %v1762
        %1812 = vset.pattern.permute.xlu0 0
        %1813 = vperm.xlu0 %1812, %v1779
        %v1814 = vpop.permute.xlu0 %1813
        %1817 = vset.pattern.permute.xlu0 0
        %1818 = vperm.xlu0 %1817, %v1780
        %v1819 = vpop.permute.xlu0 %1818
        %1822 = vset.pattern.permute.xlu0 0
        %1823 = vperm.xlu0 %1822, %v1781
        %v1824 = vpop.permute.xlu0 %1823
        %1827 = vset.pattern.permute.xlu0 0
        %1828 = vperm.xlu0 %1827, %v1782
        %v1829 = vpop.permute.xlu0 %1828
        %1832 = vset.pattern.permute.xlu0 0
        %1833 = vperm.xlu0 %1832, %v1783
        %v1834 = vpop.permute.xlu0 %1833
        %1837 = vset.pattern.permute.xlu0 0
        %1838 = vperm.xlu0 %1837, %v1784
        %v1839 = vpop.permute.xlu0 %1838
        %1842 = vset.pattern.permute.xlu0 0
        %1843 = vperm.xlu0 %1842, %v1785
        %v1844 = vpop.permute.xlu0 %1843
        %1847 = vset.pattern.permute.xlu0 0
        %1848 = vperm.xlu0 %1847, %v1786
        %v1849 = vpop.permute.xlu0 %1848
        %1852 = vset.pattern.permute.xlu0 0
        %1853 = vperm.xlu0 %1852, %v1787
        %v1854 = vpop.permute.xlu0 %1853
        %1857 = vset.pattern.permute.xlu0 0
        %1858 = vperm.xlu0 %1857, %v1788
        %v1859 = vpop.permute.xlu0 %1858
        %1862 = vset.pattern.permute.xlu0 0
        %1863 = vperm.xlu0 %1862, %v1789
        %v1864 = vpop.permute.xlu0 %1863
        %1867 = vset.pattern.permute.xlu0 0
        %1868 = vperm.xlu0 %1867, %v1790
        %v1869 = vpop.permute.xlu0 %1868
        %1872 = vset.pattern.permute.xlu0 0
        %1873 = vperm.xlu0 %1872, %v1791
        %v1874 = vpop.permute.xlu0 %1873
        %1877 = vset.pattern.permute.xlu0 0
        %1878 = vperm.xlu0 %1877, %v1792
        %v1879 = vpop.permute.xlu0 %1878
        %1882 = vset.pattern.permute.xlu0 0
        %1883 = vperm.xlu0 %1882, %v1793
        %v1884 = vpop.permute.xlu0 %1883
        %1887 = vset.pattern.permute.xlu0 0
        %1888 = vperm.xlu0 %1887, %v1794
        %v1889 = vpop.permute.xlu0 %1888
        %1892 = vset.pattern.permute.xlu0 0
        %1893 = vperm.xlu0 %1892, %v1795
        %v1894 = vpop.permute.xlu0 %1893
        %1897 = vset.pattern.permute.xlu0 0
        %1898 = vperm.xlu0 %1897, %v1796
        %v1899 = vpop.permute.xlu0 %1898
        %1902 = vset.pattern.permute.xlu0 0
        %1903 = vperm.xlu0 %1902, %v1797
        %v1904 = vpop.permute.xlu0 %1903
        %1907 = vset.pattern.permute.xlu0 0
        %1908 = vperm.xlu0 %1907, %v1798
        %v1909 = vpop.permute.xlu0 %1908
        %1912 = vset.pattern.permute.xlu0 0
        %1913 = vperm.xlu0 %1912, %v1799
        %v1914 = vpop.permute.xlu0 %1913
        %1917 = vset.pattern.permute.xlu0 0
        %1918 = vperm.xlu0 %1917, %v1800
        %v1919 = vpop.permute.xlu0 %1918
        %1922 = vset.pattern.permute.xlu0 0
        %1923 = vperm.xlu0 %1922, %v1801
        %v1924 = vpop.permute.xlu0 %1923
        %1927 = vset.pattern.permute.xlu0 0
        %1928 = vperm.xlu0 %1927, %v1802
        %v1929 = vpop.permute.xlu0 %1928
        %1932 = vset.pattern.permute.xlu0 0
        %1933 = vperm.xlu0 %1932, %v1803
        %v1934 = vpop.permute.xlu0 %1933
        %1937 = vset.pattern.permute.xlu0 0
        %1938 = vperm.xlu0 %1937, %v1804
        %v1939 = vpop.permute.xlu0 %1938
        %1942 = vset.pattern.permute.xlu0 0
        %1943 = vperm.xlu0 %1942, %v1805
        %v1944 = vpop.permute.xlu0 %1943
        %1947 = vset.pattern.permute.xlu0 0
        %1948 = vperm.xlu0 %1947, %v1806
        %v1949 = vpop.permute.xlu0 %1948
        %1952 = vset.pattern.permute.xlu0 0
        %1953 = vperm.xlu0 %1952, %v1807
        %v1954 = vpop.permute.xlu0 %1953
        %1957 = vset.pattern.permute.xlu0 0
        %1958 = vperm.xlu0 %1957, %v1808
        %v1959 = vpop.permute.xlu0 %1958
        %1962 = vset.pattern.permute.xlu0 0
        %1963 = vperm.xlu0 %1962, %v1809
        %v1964 = vpop.permute.xlu0 %1963
        %1967 = vset.pattern.permute.xlu0 0
        %1968 = vperm.xlu0 %1967, %v1810
        %v1969 = vpop.permute.xlu0 %1968
        %v1971 = vmul.f32 %v1814, %v274
        %v1972 = vmul.f32 %v1819, %v275
        %v1973 = vmul.f32 %v1824, %v276
        %v1974 = vmul.f32 %v1829, %v277
        %v1975 = vmul.f32 %v1834, %v278
        %v1976 = vmul.f32 %v1839, %v279
        %v1977 = vmul.f32 %v1844, %v280
        %v1978 = vmul.f32 %v1849, %v281
        %v1979 = vmul.f32 %v1854, %v282
        %v1980 = vmul.f32 %v1859, %v283
        %v1981 = vmul.f32 %v1864, %v284
        %v1982 = vmul.f32 %v1869, %v285
        %v1983 = vmul.f32 %v1874, %v286
        %v1984 = vmul.f32 %v1879, %v287
        %v1985 = vmul.f32 %v1884, %v288
        %v1986 = vmul.f32 %v1889, %v289
        %v1987 = vmul.f32 %v1894, %v290
        %v1988 = vmul.f32 %v1899, %v291
        %v1989 = vmul.f32 %v1904, %v292
        %v1990 = vmul.f32 %v1909, %v293
        %v1991 = vmul.f32 %v1914, %v294
        %v1992 = vmul.f32 %v1919, %v295
        %v1993 = vmul.f32 %v1924, %v296
        %v1994 = vmul.f32 %v1929, %v297
        %v1995 = vmul.f32 %v1934, %v298
        %v1996 = vmul.f32 %v1939, %v299
        %v1997 = vmul.f32 %v1944, %v300
        %v1998 = vmul.f32 %v1949, %v301
        %v1999 = vmul.f32 %v1954, %v302
        %v2000 = vmul.f32 %v1959, %v303
        %v2001 = vmul.f32 %v1964, %v304
        %v2002 = vmul.f32 %v1969, %v305
        %v2003 = vsel %vm310, %v1971, 0.0
        %v2004 = vsel %vm310, %v1972, 0.0
        %v2005 = vadd.f32 %v2003, %v2004
        %v2006 = vrot.slane %v2005, 4
        %v2007 = vadd.f32 %v2005, %v2006
        %v2008 = vrot.slane %v2007, 2
        %v2009 = vadd.f32 %v2007, %v2008
        %v2010 = vrot.slane %v2009, 1
        %v2011 = vadd.f32 %v2009, %v2010
        %v2012 = vsel %vm310, %v1973, 0.0
        %v2013 = vsel %vm310, %v1974, 0.0
        %v2014 = vadd.f32 %v2012, %v2013
        %v2015 = vrot.slane %v2014, 4
        %v2016 = vadd.f32 %v2014, %v2015
        %v2017 = vrot.slane %v2016, 2
        %v2018 = vadd.f32 %v2016, %v2017
        %v2019 = vrot.slane %v2018, 1
        %v2020 = vadd.f32 %v2018, %v2019
        %v2021 = vsel %vm310, %v1975, 0.0
        %v2022 = vsel %vm310, %v1976, 0.0
        %v2023 = vadd.f32 %v2021, %v2022
        %v2024 = vrot.slane %v2023, 4
        %v2025 = vadd.f32 %v2023, %v2024
        %v2026 = vrot.slane %v2025, 2
        %v2027 = vadd.f32 %v2025, %v2026
        %v2028 = vrot.slane %v2027, 1
        %v2029 = vadd.f32 %v2027, %v2028
        %v2030 = vsel %vm310, %v1977, 0.0
        %v2031 = vsel %vm310, %v1978, 0.0
        %v2032 = vadd.f32 %v2030, %v2031
        %v2033 = vrot.slane %v2032, 4
        %v2034 = vadd.f32 %v2032, %v2033
        %v2035 = vrot.slane %v2034, 2
        %v2036 = vadd.f32 %v2034, %v2035
        %v2037 = vrot.slane %v2036, 1
        %v2038 = vadd.f32 %v2036, %v2037
        %v2039 = vsel %vm310, %v1979, 0.0
        %v2040 = vsel %vm310, %v1980, 0.0
        %v2041 = vadd.f32 %v2039, %v2040
        %v2042 = vrot.slane %v2041, 4
        %v2043 = vadd.f32 %v2041, %v2042
        %v2044 = vrot.slane %v2043, 2
        %v2045 = vadd.f32 %v2043, %v2044
        %v2046 = vrot.slane %v2045, 1
        %v2047 = vadd.f32 %v2045, %v2046
        %v2048 = vsel %vm310, %v1981, 0.0
        %v2049 = vsel %vm310, %v1982, 0.0
        %v2050 = vadd.f32 %v2048, %v2049
        %v2051 = vrot.slane %v2050, 4
        %v2052 = vadd.f32 %v2050, %v2051
        %v2053 = vrot.slane %v2052, 2
        %v2054 = vadd.f32 %v2052, %v2053
        %v2055 = vrot.slane %v2054, 1
        %v2056 = vadd.f32 %v2054, %v2055
        %v2057 = vsel %vm310, %v1983, 0.0
        %v2058 = vsel %vm310, %v1984, 0.0
        %v2059 = vadd.f32 %v2057, %v2058
        %v2060 = vrot.slane %v2059, 4
        %v2061 = vadd.f32 %v2059, %v2060
        %v2062 = vrot.slane %v2061, 2
        %v2063 = vadd.f32 %v2061, %v2062
        %v2064 = vrot.slane %v2063, 1
        %v2065 = vadd.f32 %v2063, %v2064
        %v2066 = vsel %vm310, %v1985, 0.0
        %v2067 = vsel %vm310, %v1986, 0.0
        %v2068 = vadd.f32 %v2066, %v2067
        %v2069 = vrot.slane %v2068, 4
        %v2070 = vadd.f32 %v2068, %v2069
        %v2071 = vrot.slane %v2070, 2
        %v2072 = vadd.f32 %v2070, %v2071
        %v2073 = vrot.slane %v2072, 1
        %v2074 = vadd.f32 %v2072, %v2073
        %v2075 = vsel %vm310, %v1987, 0.0
        %v2076 = vsel %vm310, %v1988, 0.0
        %v2077 = vadd.f32 %v2075, %v2076
        %v2078 = vrot.slane %v2077, 4
        %v2079 = vadd.f32 %v2077, %v2078
        %v2080 = vrot.slane %v2079, 2
        %v2081 = vadd.f32 %v2079, %v2080
        %v2082 = vrot.slane %v2081, 1
        %v2083 = vadd.f32 %v2081, %v2082
        %v2084 = vsel %vm310, %v1989, 0.0
        %v2085 = vsel %vm310, %v1990, 0.0
        %v2086 = vadd.f32 %v2084, %v2085
        %v2087 = vrot.slane %v2086, 4
        %v2088 = vadd.f32 %v2086, %v2087
        %v2089 = vrot.slane %v2088, 2
        %v2090 = vadd.f32 %v2088, %v2089
        %v2091 = vrot.slane %v2090, 1
        %v2092 = vadd.f32 %v2090, %v2091
        %v2093 = vsel %vm310, %v1991, 0.0
        %v2094 = vsel %vm310, %v1992, 0.0
        %v2095 = vadd.f32 %v2093, %v2094
        %v2096 = vrot.slane %v2095, 4
        %v2097 = vadd.f32 %v2095, %v2096
        %v2098 = vrot.slane %v2097, 2
        %v2099 = vadd.f32 %v2097, %v2098
        %v2100 = vrot.slane %v2099, 1
        %v2101 = vadd.f32 %v2099, %v2100
        %v2102 = vsel %vm310, %v1993, 0.0
        %v2103 = vsel %vm310, %v1994, 0.0
        %v2104 = vadd.f32 %v2102, %v2103
        %v2105 = vrot.slane %v2104, 4
        %v2106 = vadd.f32 %v2104, %v2105
        %v2107 = vrot.slane %v2106, 2
        %v2108 = vadd.f32 %v2106, %v2107
        %v2109 = vrot.slane %v2108, 1
        %v2110 = vadd.f32 %v2108, %v2109
        %v2111 = vsel %vm310, %v1995, 0.0
        %v2112 = vsel %vm310, %v1996, 0.0
        %v2113 = vadd.f32 %v2111, %v2112
        %v2114 = vrot.slane %v2113, 4
        %v2115 = vadd.f32 %v2113, %v2114
        %v2116 = vrot.slane %v2115, 2
        %v2117 = vadd.f32 %v2115, %v2116
        %v2118 = vrot.slane %v2117, 1
        %v2119 = vadd.f32 %v2117, %v2118
        %v2120 = vsel %vm310, %v1997, 0.0
        %v2121 = vsel %vm310, %v1998, 0.0
        %v2122 = vadd.f32 %v2120, %v2121
        %v2123 = vrot.slane %v2122, 4
        %v2124 = vadd.f32 %v2122, %v2123
        %v2125 = vrot.slane %v2124, 2
        %v2126 = vadd.f32 %v2124, %v2125
        %v2127 = vrot.slane %v2126, 1
        %v2128 = vadd.f32 %v2126, %v2127
        %v2129 = vsel %vm310, %v1999, 0.0
        %v2130 = vsel %vm310, %v2000, 0.0
        %v2131 = vadd.f32 %v2129, %v2130
        %v2132 = vrot.slane %v2131, 4
        %v2133 = vadd.f32 %v2131, %v2132
        %v2134 = vrot.slane %v2133, 2
        %v2135 = vadd.f32 %v2133, %v2134
        %v2136 = vrot.slane %v2135, 1
        %v2137 = vadd.f32 %v2135, %v2136
        %v2138 = vsel %vm310, %v2001, 0.0
        %v2139 = vsel %vm310, %v2002, 0.0
        %v2140 = vadd.f32 %v2138, %v2139
        %v2141 = vrot.slane %v2140, 4
        %v2142 = vadd.f32 %v2140, %v2141
        %v2143 = vrot.slane %v2142, 2
        %v2144 = vadd.f32 %v2142, %v2143
        %v2145 = vrot.slane %v2144, 1
        %v2146 = vadd.f32 %v2144, %v2145
        %v2163 = vsel %vm1193, %v2020, %v2011
        %v2164 = vsel %vm1195, %v2029, %v2163
        %v2165 = vsel %vm1197, %v2038, %v2164
        %v2166 = vsel %vm1199, %v2047, %v2165
        %v2167 = vsel %vm1201, %v2056, %v2166
        %v2168 = vsel %vm1203, %v2065, %v2167
        %v2169 = vsel %vm1205, %v2074, %v2168
        %v2170 = vsel %vm1193, %v2092, %v2083
        %v2171 = vsel %vm1195, %v2101, %v2170
        %v2172 = vsel %vm1197, %v2110, %v2171
        %v2173 = vsel %vm1199, %v2119, %v2172
        %v2174 = vsel %vm1201, %v2128, %v2173
        %v2175 = vsel %vm1203, %v2137, %v2174
        %v2176 = vsel %vm1205, %v2146, %v2175
        %v2179 = vadd.s32 %v1046, 4294967264
        %v2180 = vlaneseq
        %v2181 = vshrl.u32 %v2180, 7
        %v2182 = vsub.s32 %v2179, %v2181
        %v2183 = vrot.slane %v1814, %v2182
        %v2184 = vadd.s32 %v1046, 4294967256
        %v2185 = vlaneseq
        %v2186 = vshrl.u32 %v2185, 7
        %v2187 = vsub.s32 %v2184, %v2186
        %v2188 = vrot.slane %v1819, %v2187
        %vm2189 = vcmask 392512
        %v2190 = vsel %vm2189, %v2188, %v2183
        %v2191 = vlaneseq
        %v2192 = vshrl.u32 %v2191, 7
        %v2193 = vsub.s32 %v2179, %v2192
        %v2194 = vrot.slane %v1824, %v2193
        %v2195 = vlaneseq
        %v2196 = vshrl.u32 %v2195, 7
        %v2197 = vsub.s32 %v2184, %v2196
        %v2198 = vrot.slane %v1829, %v2197
        %v2199 = vsel %vm2189, %v2198, %v2194
        %v2200 = vlaneseq
        %v2201 = vshrl.u32 %v2200, 7
        %v2202 = vsub.s32 %v2179, %v2201
        %v2203 = vrot.slane %v1834, %v2202
        %v2204 = vlaneseq
        %v2205 = vshrl.u32 %v2204, 7
        %v2206 = vsub.s32 %v2184, %v2205
        %v2207 = vrot.slane %v1839, %v2206
        %v2208 = vsel %vm2189, %v2207, %v2203
        %v2209 = vlaneseq
        %v2210 = vshrl.u32 %v2209, 7
        %v2211 = vsub.s32 %v2179, %v2210
        %v2212 = vrot.slane %v1844, %v2211
        %v2213 = vlaneseq
        %v2214 = vshrl.u32 %v2213, 7
        %v2215 = vsub.s32 %v2184, %v2214
        %v2216 = vrot.slane %v1849, %v2215
        %v2217 = vsel %vm2189, %v2216, %v2212
        %v2218 = vlaneseq
        %v2219 = vshrl.u32 %v2218, 7
        %v2220 = vsub.s32 %v2179, %v2219
        %v2221 = vrot.slane %v1854, %v2220
        %v2222 = vlaneseq
        %v2223 = vshrl.u32 %v2222, 7
        %v2224 = vsub.s32 %v2184, %v2223
        %v2225 = vrot.slane %v1859, %v2224
        %v2226 = vsel %vm2189, %v2225, %v2221
        %v2227 = vlaneseq
        %v2228 = vshrl.u32 %v2227, 7
        %v2229 = vsub.s32 %v2179, %v2228
        %v2230 = vrot.slane %v1864, %v2229
        %v2231 = vlaneseq
        %v2232 = vshrl.u32 %v2231, 7
        %v2233 = vsub.s32 %v2184, %v2232
        %v2234 = vrot.slane %v1869, %v2233
        %v2235 = vsel %vm2189, %v2234, %v2230
        %v2236 = vlaneseq
        %v2237 = vshrl.u32 %v2236, 7
        %v2238 = vsub.s32 %v2179, %v2237
        %v2239 = vrot.slane %v1874, %v2238
        %v2240 = vlaneseq
        %v2241 = vshrl.u32 %v2240, 7
        %v2242 = vsub.s32 %v2184, %v2241
        %v2243 = vrot.slane %v1879, %v2242
        %v2244 = vsel %vm2189, %v2243, %v2239
        %v2245 = vlaneseq
        %v2246 = vshrl.u32 %v2245, 7
        %v2247 = vsub.s32 %v2179, %v2246
        %v2248 = vrot.slane %v1884, %v2247
        %v2249 = vlaneseq
        %v2250 = vshrl.u32 %v2249, 7
        %v2251 = vsub.s32 %v2184, %v2250
        %v2252 = vrot.slane %v1889, %v2251
        %v2253 = vsel %vm2189, %v2252, %v2248
        %v2254 = vlaneseq
        %v2255 = vshrl.u32 %v2254, 7
        %v2256 = vsub.s32 %v2179, %v2255
        %v2257 = vrot.slane %v1894, %v2256
        %v2258 = vlaneseq
        %v2259 = vshrl.u32 %v2258, 7
        %v2260 = vsub.s32 %v2184, %v2259
        %v2261 = vrot.slane %v1899, %v2260
        %v2262 = vsel %vm2189, %v2261, %v2257
        %v2263 = vlaneseq
        %v2264 = vshrl.u32 %v2263, 7
        %v2265 = vsub.s32 %v2179, %v2264
        %v2266 = vrot.slane %v1904, %v2265
        %v2267 = vlaneseq
        %v2268 = vshrl.u32 %v2267, 7
        %v2269 = vsub.s32 %v2184, %v2268
        %v2270 = vrot.slane %v1909, %v2269
        %v2271 = vsel %vm2189, %v2270, %v2266
        %v2272 = vlaneseq
        %v2273 = vshrl.u32 %v2272, 7
        %v2274 = vsub.s32 %v2179, %v2273
        %v2275 = vrot.slane %v1914, %v2274
        %v2276 = vlaneseq
        %v2277 = vshrl.u32 %v2276, 7
        %v2278 = vsub.s32 %v2184, %v2277
        %v2279 = vrot.slane %v1919, %v2278
        %v2280 = vsel %vm2189, %v2279, %v2275
        %v2281 = vlaneseq
        %v2282 = vshrl.u32 %v2281, 7
        %v2283 = vsub.s32 %v2179, %v2282
        %v2284 = vrot.slane %v1924, %v2283
        %v2285 = vlaneseq
        %v2286 = vshrl.u32 %v2285, 7
        %v2287 = vsub.s32 %v2184, %v2286
        %v2288 = vrot.slane %v1929, %v2287
        %v2289 = vsel %vm2189, %v2288, %v2284
        %v2290 = vlaneseq
        %v2291 = vshrl.u32 %v2290, 7
        %v2292 = vsub.s32 %v2179, %v2291
        %v2293 = vrot.slane %v1934, %v2292
        %v2294 = vlaneseq
        %v2295 = vshrl.u32 %v2294, 7
        %v2296 = vsub.s32 %v2184, %v2295
        %v2297 = vrot.slane %v1939, %v2296
        %v2298 = vsel %vm2189, %v2297, %v2293
        %v2299 = vlaneseq
        %v2300 = vshrl.u32 %v2299, 7
        %v2301 = vsub.s32 %v2179, %v2300
        %v2302 = vrot.slane %v1944, %v2301
        %v2303 = vlaneseq
        %v2304 = vshrl.u32 %v2303, 7
        %v2305 = vsub.s32 %v2184, %v2304
        %v2306 = vrot.slane %v1949, %v2305
        %v2307 = vsel %vm2189, %v2306, %v2302
        %v2308 = vlaneseq
        %v2309 = vshrl.u32 %v2308, 7
        %v2310 = vsub.s32 %v2179, %v2309
        %v2311 = vrot.slane %v1954, %v2310
        %v2312 = vlaneseq
        %v2313 = vshrl.u32 %v2312, 7
        %v2314 = vsub.s32 %v2184, %v2313
        %v2315 = vrot.slane %v1959, %v2314
        %v2316 = vsel %vm2189, %v2315, %v2311
        %v2317 = vlaneseq
        %v2318 = vshrl.u32 %v2317, 7
        %v2319 = vsub.s32 %v2179, %v2318
        %v2320 = vrot.slane %v1964, %v2319
        %v2321 = vlaneseq
        %v2322 = vshrl.u32 %v2321, 7
        %v2323 = vsub.s32 %v2184, %v2322
        %v2324 = vrot.slane %v1969, %v2323
        %v2325 = vsel %vm2189, %v2324, %v2320
        %v2326 = vsel %vm1193, %v2199, %v2190
        %v2327 = vsel %vm1195, %v2208, %v2326
        %v2328 = vsel %vm1197, %v2217, %v2327
        %v2329 = vsel %vm1199, %v2226, %v2328
        %v2330 = vsel %vm1201, %v2235, %v2329
        %v2331 = vsel %vm1203, %v2244, %v2330
        %v2332 = vsel %vm1205, %v2253, %v2331
        %v2333 = vsel %vm1193, %v2271, %v2262
        %v2334 = vsel %vm1195, %v2280, %v2333
        %v2335 = vsel %vm1197, %v2289, %v2334
        %v2336 = vsel %vm1199, %v2298, %v2335
        %v2337 = vsel %vm1201, %v2307, %v2336
        %v2338 = vsel %vm1203, %v2316, %v2337
        %v2339 = vsel %vm1205, %v2325, %v2338
        %v2342 = vsel %vm310, %v2169, %v2332
        %v2343 = vsel %vm310, %v2176, %v2339
        %vm2344 = vcmask 392192
        %v2345 = vsel %vm2344, %v2342, 0.0
        %v2346 = vsel %vm2344, %v2343, 0.0
        %2347 = vst [vmem:[%s270] sm:$0xff] %v2345
        %2348 = vst [vmem:[%s270 + $0x8] sm:$0xff] %v2346
        %s2349 = sand.u32 %s126, 1
        %s2350 = scalar_lea.sflag [#allocation4], %s2349
        %s2351 = sand.u32 %s126, 1
        %s2352 = smul.addr %s2351, 16
        %s2353 = scalar_lea.vmem [#allocation8], %s2352
        // Predicated region
        $region49: #{tpu_custom_call.1} parent=35 // pred_check
          %p2354 = pneg %p136
        $region50: #{tpu_custom_call.1} parent=35 // pred_check_branch
          %2356 = sbr.rel (%p2354) target = $region52
        $region51: #{tpu_custom_call.1} parent=35 // pred_region
          %s2357 = smul.u32 2, %s24
          %s2359 = ssub.s32 256, 256
          %2360 = vsyncadd %s2350, %s2359
          %s2361 = smul.addr %s2357, 128
          %s2362 = scalar_lea.hbm %s4, %s2361
          %s2363 = sshll.u32 %s2353, 4
          %s2364 = int_to_ptr.vmem [resolvable:$true] %s2363
          %2369 = dma.vmem_to_hbm [thread:$0]  %s2364, 256, %s2362, %s2350, 128, 128, 8
        $region52: #{tpu_custom_call.1} parent=35 // pred_fallthru
          _
      $region36: #{tpu_custom_call.1} parent=5 // pred_fallthru
        _
      %p2370 = scmp.le.s32.totalorder 2, %s19
      // Predicated region
      $region53: #{tpu_custom_call.1} parent=5 // pred_check
        %p2371 = pneg %p2370
      $region54: #{tpu_custom_call.1} parent=5 // pred_check_branch
        %2373 = sbr.rel (%p2371) target = $region56
      $region55: #{tpu_custom_call.1} parent=5 // pred_region
        %s2374 = ssub.s32 %s19, 2
        // Predicated region
        $region57: #{tpu_custom_call.1} parent=55 // pred_check
          %p2375 = pneg %p142
        $region58: #{tpu_custom_call.1} parent=55 // pred_check_branch
          %2377 = sbr.rel (%p2375) target = $region60
        $region59: #{tpu_custom_call.1} parent=55 // pred_region
          %s2378 = sand.u32 %s127, 1
          %s2379 = scalar_lea.sflag [#allocation4], %s2378
          %s2380 = sand.u32 %s127, 1
          %s2381 = smul.addr %s2380, 16
          %s2382 = scalar_lea.vmem [#allocation8], %s2381
          %2383 = dma.done %s2379, 256
        $region60: #{tpu_custom_call.1} parent=55 // pred_fallthru
          _
      $region56: #{tpu_custom_call.1} parent=5 // pred_fallthru
        _
    $region6: #{tpu_custom_call.1} parent=1 // loop_footer
      %s23 = sadd.s32 1, %s19
    $region7: #{tpu_custom_call.1} parent=1 // loop_footer_branch
      %18 = sbr.rel target = $region3
    $region8: #{tpu_custom_call.1} parent=1 // loop_exit
      _
    %2384 = vsyncpa [#allocation3], 1
    %s2385 = scalar_lea.sflag [#allocation3], 1
    %2386 = vsyncpa %s2385, 1
    %2387 = vsyncpa [#allocation6], 1
    %s2388 = scalar_lea.sflag [#allocation6], 1
    %2389 = vsyncpa %s2388, 1
    %2390 = vsyncpa [#allocation4], 1
    %s2391 = scalar_lea.sflag [#allocation4], 1
    %2392 = vsyncpa %s2391, 1

</llo_original>
